<compile_context>
chip_gen: v7x
topology: tpu7x:2x2x1
jax: 0.10.0
libtpu: 0.0.40
codegen_flags: <defaults>
</compile_context>

<pallas_src>
import functools

import jax
import jax.numpy as jnp
from jax.experimental import pallas as pl
from jax.experimental.pallas import tpu as pltpu


# ---------------------------------------------------------------------------
# Per-chip configuration (resolved once at import time; static at trace time).
# ---------------------------------------------------------------------------
def _device_kind() -> str:
    try:
        return jax.devices()[0].device_kind.lower()
    except Exception:  # defensive: fall back to conservative settings
        return ""


_KIND = _device_kind()
# bf16 VPU/EUP exists on v6e / v7x; v5e (and older) keep elementwise math in f32.
_ACT_DTYPE = jnp.bfloat16 if ("v6" in _KIND or "v7" in _KIND) else jnp.float32
# Physical VMEM per TensorCore: 64 MiB on v7x, 128 MiB on v5e/v6e.
_PHYS_VMEM = (64 << 20) if "v7" in _KIND else (128 << 20)
_VMEM_BUDGET = int(0.70 * _PHYS_VMEM)          # leave headroom for compiler scratch
_PREFER_EVEN_STEPS = "v7" in _KIND             # 2 TensorCores per chip on v7x


# ---------------------------------------------------------------------------
# Kernel
# ---------------------------------------------------------------------------
def _attention_kernel(hidden_ref, enc_ref, wht_ref, wet_ref, b_ref, v_ref, out_ref,
                      *, act_dtype):
    """Bahdanau attention for one batch tile (full src_len resident).

    hidden_ref : (Bt, Hd)      f32   decoder hidden state tile
    enc_ref    : (Bt, S, De)   bf16  encoder outputs, batch-major (prepared once)
    wht_ref    : (Hd, Dd)      bf16  attn_fc weight, hidden half (transposed)
    wet_ref    : (De, Dd)      bf16  attn_fc weight, encoder half (transposed)
    b_ref      : (1, Dd)       f32   attn_fc bias
    v_ref      : (1, Dd)       f32   v_fc weight row
    out_ref    : (Bt, S)       f32   softmax over src_len
    """
    Bt, S, De = enc_ref.shape
    Dd = wet_ref.shape[1]

    # attn_fc(concat(hidden, enc)) == hidden @ Wh^T + enc @ We^T + b (no concat made).
    h_part = jnp.dot(hidden_ref[...].astype(jnp.bfloat16), wht_ref[...],
                     preferred_element_type=jnp.float32) + b_ref[...]          # (Bt, Dd)

    # Collapse the two leading dims only (last dim unchanged -> layout-friendly view).
    enc2d = enc_ref[...].reshape(Bt * S, De)                                   # bf16
    e_part = jnp.dot(enc2d, wet_ref[...],
                     preferred_element_type=jnp.float32).reshape(Bt, S, Dd)    # f32

    # tanh + v-projection: bf16 on v6e/v7x (bf16 EUP/VPU), f32 on v5e.
    energy = jnp.tanh((e_part + h_part[:, None, :]).astype(act_dtype))         # (Bt, S, Dd)
    v_row = v_ref[...].astype(act_dtype)
    # VPU multiply + lane reduce in f32 (avoids a lane-sparse N=1 MXU matmul).
    score = jnp.sum((energy * v_row).astype(jnp.float32), axis=-1)             # (Bt, S)

    # Numerically stable softmax over src_len (last axis -> output is already (Bt, S)).
    m = jnp.max(score, axis=-1, keepdims=True)
    ex = jnp.exp(score - m)
    denom = jnp.sum(ex, axis=-1, keepdims=True)
    inv = pl.reciprocal(denom, approx=True)
    inv = inv * (2.0 - denom * inv)          # one Newton step keeps row sums ~1
    out_ref[...] = ex * inv


# ---------------------------------------------------------------------------
# One-time preparation (hoisted out of the per-decoder-step call)
# ---------------------------------------------------------------------------
def prepare_attention_params(attn_w, attn_b, v_w, hidden_dim):
    """Split / transpose / bf16-cast the attn_fc and v_fc parameters once.

    attn_w: (Dd, hidden_dim + 2*enc_hid)   nn.Linear weight (concat order: hidden, encoder)
    attn_b: (Dd,)                           nn.Linear bias
    v_w:    (1, Dd)                         nn.Linear(dec, 1, bias=False) weight
    """
    Dd = attn_w.shape[0]
    wht = attn_w[:, :hidden_dim].T.astype(jnp.bfloat16)   # (Hd, Dd)
    wet = attn_w[:, hidden_dim:].T.astype(jnp.bfloat16)   # (De, Dd)
    b2d = attn_b.reshape(1, Dd).astype(jnp.float32)       # (1, Dd)
    v_row = v_w.reshape(1, Dd).astype(jnp.float32)        # (1, Dd)
    return wht, wet, b2d, v_row


def prepare_encoder_outputs(encoder_outputs):
    """One-time relayout: seq-major f32 (S, B, De) -> batch-major bf16 (B, S, De).

    Encoder outputs are reused for every decoder timestep, so this cast/transpose
    amortizes; it halves per-call HBM traffic and makes each batch-tile DMA contiguous.
    """
    return jnp.transpose(encoder_outputs, (1, 0, 2)).astype(jnp.bfloat16)


# ---------------------------------------------------------------------------
# Tiling / VMEM budgeting
# ---------------------------------------------------------------------------
def _tile_footprint_bytes(Bt, S, De, Hd, Dd):
    """Rough per-step VMEM footprint: double-buffered operands + f32 intermediates."""
    enc = Bt * S * De * 2 * 2            # bf16 enc tile, double-buffered
    hid = Bt * Hd * 4 * 2                # f32 hidden tile
    out = Bt * S * 4 * 2                 # f32 output tile
    wts = (Hd * Dd + De * Dd) * 2 * 2    # resident bf16 weights (still 2 buffers each)
    small = 2 * Dd * 4 * 2               # bias + v row
    interm = Bt * S * Dd * 4 * 3         # e_part / energy / temporaries (f32-equivalent)
    return enc + hid + out + wts + small + interm


def _pick_batch_tile(B, S, De, Hd, Dd, budget, prefer_even_steps):
    """Largest batch tile (multiple of 8 dividing B) whose footprint fits the budget.

    Prefers a single grid step; on v7x prefers an even step count when tiling is forced.
    """
    if B % 8 != 0:
        return B                          # full-batch block (legal; sublane-padded)
    cands = [bt for bt in range(B, 0, -8) if B % bt == 0]
    fitting = [bt for bt in cands if _tile_footprint_bytes(bt, S, De, Hd, Dd) <= budget]
    if not fitting:
        # TODO(synk): add an S-tiled two-pass / online-softmax path so Bt can stay large
        # when src_len is too long for a full-S-resident tile (matters on v7x's 64 MiB).
        return 8
    best = fitting[0]
    steps = B // best
    if prefer_even_steps and steps > 1 and steps % 2 == 1:
        even = [bt for bt in fitting if (B // bt) % 2 == 0]
        if even:
            best = even[0]
    return best


# ---------------------------------------------------------------------------
# Forward
# ---------------------------------------------------------------------------
@jax.jit
def attention_forward(hidden, enc_bf16, wht, wet, b2d, v_row):
    """Mirrors Attention.forward.

    hidden:   (B, Hd)      f32
    enc_bf16: (B, S, De)   bf16  batch-major (from prepare_encoder_outputs)
    returns:  (B, S)       f32   softmax attention weights
    """
    B, S, De = enc_bf16.shape
    Hd = hidden.shape[1]
    Dd = wet.shape[1]

    Bt = _pick_batch_tile(B, S, De, Hd, Dd, _VMEM_BUDGET, _PREFER_EVEN_STEPS)
    footprint = _tile_footprint_bytes(Bt, S, De, Hd, Dd)
    vmem_limit = int(min(_VMEM_BUDGET, max(32 << 20, footprint + (8 << 20))))

    kernel = functools.partial(_attention_kernel, act_dtype=_ACT_DTYPE)

    return pl.pallas_call(
        kernel,
        out_shape=jax.ShapeDtypeStruct((B, S), jnp.float32),
        grid_spec=pltpu.PrefetchScalarGridSpec(
            num_scalar_prefetch=0,
            grid=(B // Bt,),
            in_specs=[
                pl.BlockSpec((Bt, Hd), lambda i: (i, 0)),         # hidden tile
                pl.BlockSpec((Bt, S, De), lambda i: (i, 0, 0)),   # enc tile (contiguous DMA)
                pl.BlockSpec((Hd, Dd), lambda i: (0, 0)),         # wht (resident)
                pl.BlockSpec((De, Dd), lambda i: (0, 0)),         # wet (resident)
                pl.BlockSpec((1, Dd), lambda i: (0, 0)),          # bias (resident)
                pl.BlockSpec((1, Dd), lambda i: (0, 0)),          # v row (resident)
            ],
            out_specs=pl.BlockSpec((Bt, S), lambda i: (i, 0)),
        ),
        compiler_params=pltpu.CompilerParams(
            dimension_semantics=("parallel",),        # batch tiles split across TCs on v7x
            vmem_limit_bytes=vmem_limit,              # footprint-derived, chip-aware cap
        ),
    )(hidden, enc_bf16, wht, wet, b2d, v_row)


# ---------------------------------------------------------------------------
# Pure-JAX reference (replicates the PyTorch forward exactly, in f32)
# ---------------------------------------------------------------------------
def attention_reference(hidden, encoder_outputs, attn_w, attn_b, v_w):
    S = encoder_outputs.shape[0]
    h = jnp.repeat(hidden[:, None, :], S, axis=1)              # (B, S, Hd)
    enc = jnp.transpose(encoder_outputs, (1, 0, 2))            # (B, S, De)
    cat = jnp.concatenate([h, enc], axis=2)                    # (B, S, Hd+De)
    energy = jnp.tanh(jnp.einsum("bsk,dk->bsd", cat, attn_w) + attn_b)
    attention = jnp.einsum("bsd,od->bso", energy, v_w)[..., 0]
    return jax.nn.softmax(attention, axis=1)


if __name__ == "__main__":
    # Small shapes consistent with the module's forward (scaled-down dims).
    B = 24          # batch            (largest legal tile = 24 -> grid has a single step)
    S = 16          # src_length
    He = 64         # encoder_hidden_dim -> encoder features De = 2*He
    Hd = 128        # decoder_hidden_dim (= Dd)
    De = 2 * He
    Dd = Hd

    key = jax.random.PRNGKey(0)
    k1, k2, k3, k4, k5 = jax.random.split(key, 5)

    # Deterministic synthetic parameters (nn.Linear-shaped), concat order = (hidden, encoder).
    attn_w = jax.random.normal(k1, (Dd, Hd + De), dtype=jnp.float32) * 0.1
    attn_b = jax.random.normal(k2, (Dd,), dtype=jnp.float32) * 0.1
    v_w = jax.random.normal(k3, (1, Dd), dtype=jnp.float32) * 0.1

    # Inputs matching PyTorch conventions (encoder outputs seq-major f32).
    hidden = jax.random.normal(k4, (B, Hd), dtype=jnp.float32)
    encoder_outputs = jax.random.normal(k5, (S, B, De), dtype=jnp.float32)

    # One-time preparation (amortized across decoder timesteps).
    params = prepare_attention_params(attn_w, attn_b, v_w, Hd)
    enc_prepared = prepare_encoder_outputs(encoder_outputs)

    out = attention_forward(hidden, enc_prepared, *params)
    out = jax.block_until_ready(out)

    ref = attention_reference(hidden, encoder_outputs, attn_w, attn_b, v_w)
    assert out.shape == (B, S)
    # Rows of a softmax must sum to 1 (approx reciprocal + Newton step keeps this tight).
    assert jnp.allclose(jnp.sum(out, axis=1), 1.0, atol=1e-4), "softmax rows must sum to 1"
    # bf16 MXU operands (+ bf16 tanh on v6e/v7x) vs f32 reference: loosened tolerance.
    assert jnp.allclose(out, ref, atol=1e-2, rtol=1e-2), "mismatch vs f32 reference"

    print("KERNEL_OK")
</pallas_src>

<mosaic_0001>
module attributes {stable_mosaic.version = 11 : i64} {
  func.func @_attention_kernel(%arg0: i32, %arg1: memref<24x128xf32, #tpu.memory_space<vmem>>, %arg2: memref<24x16x128xbf16, #tpu.memory_space<vmem>>, %arg3: memref<128x128xbf16, #tpu.memory_space<vmem>>, %arg4: memref<128x128xbf16, #tpu.memory_space<vmem>>, %arg5: memref<1x128xf32, #tpu.memory_space<vmem>>, %arg6: memref<1x128xf32, #tpu.memory_space<vmem>>, %arg7: memref<24x16xf32, #tpu.memory_space<vmem>>) attributes {dimension_semantics = [#tpu.dimension_semantics<parallel>], iteration_bounds = array<i64: 1>, scalar_prefetch = 0 : i64, scratch_operands = 0 : i64, tpu.core_type = #tpu.core_type<tc>, window_params = [{transform_indices = @transform_0, window_bounds = array<i64: 24, 128>}, {transform_indices = @transform_1, window_bounds = array<i64: 24, 16, 128>}, {pipeline_mode = #tpu.pipeline_mode<synchronous>, transform_indices = @transform_2, window_bounds = array<i64: 128, 128>}, {pipeline_mode = #tpu.pipeline_mode<synchronous>, transform_indices = @transform_3, window_bounds = array<i64: 128, 128>}, {pipeline_mode = #tpu.pipeline_mode<synchronous>, transform_indices = @transform_4, window_bounds = array<i64: 1, 128>}, {pipeline_mode = #tpu.pipeline_mode<synchronous>, transform_indices = @transform_5, window_bounds = array<i64: 1, 128>}, {transform_indices = @transform_6, window_bounds = array<i64: 24, 16>}]} {
    %c0 = arith.constant 0 : index
    %c0_0 = arith.constant 0 : index
    %0 = vector.load %arg1[%c0, %c0_0] : memref<24x128xf32, #tpu.memory_space<vmem>>, vector<24x128xf32>
    %1 = arith.truncf %0 : vector<24x128xf32> to vector<24x128xbf16>
    %c0_1 = arith.constant 0 : index
    %c0_2 = arith.constant 0 : index
    %2 = vector.load %arg3[%c0_1, %c0_2] : memref<128x128xbf16, #tpu.memory_space<vmem>>, vector<128x128xbf16>
    %cst = arith.constant dense<0.000000e+00> : vector<24x128xf32>
    %3 = tpu.matmul %1, %2, %cst {dimension_numbers = #tpu.dot_dimension_numbers<[1], [0], [0], [1], [0, 0, 1, 1], [], []>} : vector<24x128xbf16>, vector<128x128xbf16>, vector<24x128xf32> -> vector<24x128xf32>
    %c0_3 = arith.constant 0 : index
    %c0_4 = arith.constant 0 : index
    %4 = vector.load %arg5[%c0_3, %c0_4] : memref<1x128xf32, #tpu.memory_space<vmem>>, vector<1x128xf32>
    %5 = vector.broadcast %4 : vector<1x128xf32> to vector<24x128xf32>
    %6 = arith.addf %3, %5 : vector<24x128xf32>
    %c0_5 = arith.constant 0 : index
    %c0_6 = arith.constant 0 : index
    %c0_7 = arith.constant 0 : index
    %7 = vector.load %arg2[%c0_5, %c0_6, %c0_7] : memref<24x16x128xbf16, #tpu.memory_space<vmem>>, vector<24x16x128xbf16>
    %8 = vector.shape_cast %7 : vector<24x16x128xbf16> to vector<384x128xbf16>
    %c0_8 = arith.constant 0 : index
    %c0_9 = arith.constant 0 : index
    %9 = vector.load %arg4[%c0_8, %c0_9] : memref<128x128xbf16, #tpu.memory_space<vmem>>, vector<128x128xbf16>
    %cst_10 = arith.constant dense<0.000000e+00> : vector<384x128xf32>
    %10 = tpu.matmul %8, %9, %cst_10 {dimension_numbers = #tpu.dot_dimension_numbers<[1], [0], [0], [1], [0, 0, 1, 1], [], []>} : vector<384x128xbf16>, vector<128x128xbf16>, vector<384x128xf32> -> vector<384x128xf32>
    %11 = vector.shape_cast %10 : vector<384x128xf32> to vector<24x16x128xf32>
    %12 = vector.shape_cast %6 : vector<24x128xf32> to vector<24x1x128xf32>
    %13 = vector.broadcast %12 : vector<24x1x128xf32> to vector<24x16x128xf32>
    %14 = arith.addf %11, %13 : vector<24x16x128xf32>
    %15 = math.tanh %14 : vector<24x16x128xf32>
    %c0_11 = arith.constant 0 : index
    %c0_12 = arith.constant 0 : index
    %16 = vector.load %arg6[%c0_11, %c0_12] : memref<1x128xf32, #tpu.memory_space<vmem>>, vector<1x128xf32>
    %17 = vector.shape_cast %16 : vector<1x128xf32> to vector<1x1x128xf32>
    %18 = vector.broadcast %17 : vector<1x1x128xf32> to vector<24x16x128xf32>
    %19 = arith.mulf %15, %18 : vector<24x16x128xf32>
    %cst_13 = arith.constant dense<0.000000e+00> : vector<24x16xf32>
    %20 = vector.multi_reduction <add>, %19, %cst_13 [2] : vector<24x16x128xf32> to vector<24x16xf32>
    %cst_14 = arith.constant dense<0xFF800000> : vector<24xf32>
    %21 = vector.multi_reduction <maximumf>, %20, %cst_14 [1] : vector<24x16xf32> to vector<24xf32>
    %22 = vector.shape_cast %21 : vector<24xf32> to vector<24x1xf32>
    %23 = vector.broadcast %22 : vector<24x1xf32> to vector<24x16xf32>
    %24 = arith.subf %20, %23 : vector<24x16xf32>
    %25 = math.exp %24 : vector<24x16xf32>
    %cst_15 = arith.constant dense<0.000000e+00> : vector<24xf32>
    %26 = vector.multi_reduction <add>, %25, %cst_15 [1] : vector<24x16xf32> to vector<24xf32>
    %27 = vector.shape_cast %26 : vector<24xf32> to vector<24x1xf32>
    %28 = tpu.reciprocal %27 {approx = true} : vector<24x1xf32> -> vector<24x1xf32>
    %29 = arith.mulf %27, %28 : vector<24x1xf32>
    %cst_16 = arith.constant 2.000000e+00 : f32
    %30 = vector.broadcast %cst_16 : f32 to vector<24x1xf32>
    %31 = arith.subf %30, %29 : vector<24x1xf32>
    %32 = arith.mulf %28, %31 : vector<24x1xf32>
    %33 = vector.broadcast %32 : vector<24x1xf32> to vector<24x16xf32>
    %34 = arith.mulf %25, %33 : vector<24x16xf32>
    %c0_17 = arith.constant 0 : index
    %c0_18 = arith.constant 0 : index
    %35 = vector.load %arg7[%c0_17, %c0_18] : memref<24x16xf32, #tpu.memory_space<vmem>>, vector<24x16xf32>
    tpu.vector_store %arg7[%c0_17, %c0_18], %34 {strides = array<i32>} : memref<24x16xf32, #tpu.memory_space<vmem>>, vector<24x16xf32>,
    return
  }
  func.func @transform_0(%arg0: i32) -> (i32, i32) {
    %c0_i32 = arith.constant 0 : i32
    %c0_i32_0 = arith.constant 0 : i32
    return %arg0, %c0_i32 : i32, i32
  }
  func.func @transform_1(%arg0: i32) -> (i32, i32, i32) {
    %c0_i32 = arith.constant 0 : i32
    %c0_i32_0 = arith.constant 0 : i32
    %c0_i32_1 = arith.constant 0 : i32
    return %arg0, %c0_i32, %c0_i32_0 : i32, i32, i32
  }
  func.func @transform_2(%arg0: i32) -> (i32, i32) {
    %c0_i32 = arith.constant 0 : i32
    %c0_i32_0 = arith.constant 0 : i32
    %c0_i32_1 = arith.constant 0 : i32
    return %c0_i32, %c0_i32_0 : i32, i32
  }
  func.func @transform_3(%arg0: i32) -> (i32, i32) {
    %c0_i32 = arith.constant 0 : i32
    %c0_i32_0 = arith.constant 0 : i32
    %c0_i32_1 = arith.constant 0 : i32
    return %c0_i32, %c0_i32_0 : i32, i32
  }
  func.func @transform_4(%arg0: i32) -> (i32, i32) {
    %c0_i32 = arith.constant 0 : i32
    %c0_i32_0 = arith.constant 0 : i32
    %c0_i32_1 = arith.constant 0 : i32
    return %c0_i32, %c0_i32_0 : i32, i32
  }
  func.func @transform_5(%arg0: i32) -> (i32, i32) {
    %c0_i32 = arith.constant 0 : i32
    %c0_i32_0 = arith.constant 0 : i32
    %c0_i32_1 = arith.constant 0 : i32
    return %c0_i32, %c0_i32_0 : i32, i32
  }
  func.func @transform_6(%arg0: i32) -> (i32, i32) {
    %c0_i32 = arith.constant 0 : i32
    %c0_i32_0 = arith.constant 0 : i32
    return %arg0, %c0_i32 : i32, i32
  }
}

</mosaic_0001>

<llo_original>
// kernel: attention_forward.1
$region0: #{attention_forward.1}
  #allocation0 [shape = 'u32[]', space=smem, size = 0x4, offset = 0x4, fixed_abs, tag = 'smem constant byte address 0x4 - core index']
  #allocation1 [shape = 'u32[144,128]{1,0:T(1,128)}', space=vmem, size = 0x12000, scoped, tag = 'internal scratch']
  %s0 = inlined_call_operand.hbm [shape: f32[24,128], index: 0, kind: input, shape index: {}]
  %s1 = inlined_call_operand.hbm [shape: bf16[24,16,128], index: 1, kind: input, shape index: {}]
  %s2 = inlined_call_operand.hbm [shape: bf16[128,128], index: 2, kind: input, shape index: {}]
  %s3 = inlined_call_operand.hbm [shape: bf16[128,128], index: 3, kind: input, shape index: {}]
  %s4 = inlined_call_operand.vmem [shape: f32[1,128], index: 4, kind: input, shape index: {}]
  %s5 = inlined_call_operand.vmem [shape: f32[1,128], index: 5, kind: input, shape index: {}]
  %s6 = inlined_call_operand.vmem [shape: f32[24,16], index: 6, kind: output, shape index: {}]
  %s7 = sld [smem:[#allocation0]]
  $region50: #{attention_forward.1} parent=0
    _
  %s9 = ssub.s32 1, %s7
  %s10 = scalar_select 0, %s9, %s7
  $region1: #{attention_forward.1} parent=0
    #allocation2 [shape = 'u8[12288]{0}', space=vmem, size = 0x3000, scoped, tag = 'input window, operand 0, single buffered']
    #allocation3 [shape = 's32[1]{0}', space=sflag, size = 0x4, scoped, tag = 'scoped memory for attention_forward.1']
    #allocation4 [shape = 'u8[98304]{0}', space=vmem, size = 0x18000, scoped, tag = 'input window, operand 1, single buffered']
    #allocation5 [shape = 's32[1]{0}', space=sflag, size = 0x4, scoped, tag = 'scoped memory for attention_forward.1']
    #allocation6 [shape = 'u8[32768]{0}', space=vmem, size = 0x8000, scoped, tag = 'input window, operand 2, single buffered']
    #allocation7 [shape = 'u8[32768]{0}', space=vmem, size = 0x8000, scoped, tag = 'input window, operand 3, single buffered']
    #allocation8 [shape = 's32[1]{0}', space=sflag, size = 0x4, scoped, tag = 'scoped memory for attention_forward.1']
    %11 = vsyncpa [#allocation3], 0
    %12 = vsyncpa [#allocation5], 0
    %13 = vsyncpa [#allocation8], 0
    // Predicated region
    $region2: #{attention_forward.1} parent=1 // pred_check
      _
    $region3: #{attention_forward.1} parent=1 // pred_check_branch
      %15 = sbr.rel (0) target = $region5
    $region4: #{attention_forward.1} parent=1 // pred_region
      %s17 = ssub.s32 384, 384
      %18 = vsyncadd [#allocation3], %s17
      %s19 = sshll.u32 [#allocation2], 4
      %s20 = int_to_ptr.vmem [resolvable:$true] %s19
      %25 = dma.hbm_to_vmem [thread:$0]  %s0, 384, %s20, [#allocation3], 128, 128, 8
    $region5: #{attention_forward.1} parent=1 // pred_fallthru
      _
    // Predicated region
    $region6: #{attention_forward.1} parent=1 // pred_check
      _
    $region7: #{attention_forward.1} parent=1 // pred_check_branch
      %27 = sbr.rel (0) target = $region9
    $region8: #{attention_forward.1} parent=1 // pred_region
      %s29 = ssub.s32 3072, 3072
      %30 = vsyncadd [#allocation5], %s29
      %s31 = sshll.u32 [#allocation4], 4
      %s32 = int_to_ptr.vmem [resolvable:$true] %s31
      %37 = dma.hbm_to_vmem [thread:$0]  %s1, 3072, %s32, [#allocation5], 64, 64, 4
    $region9: #{attention_forward.1} parent=1 // pred_fallthru
      _
    // Predicated region
    $region10: #{attention_forward.1} parent=1 // pred_check
      _
    $region11: #{attention_forward.1} parent=1 // pred_check_branch
      %39 = sbr.rel (0) target = $region13
    $region12: #{attention_forward.1} parent=1 // pred_region
      %s41 = ssub.s32 1024, 1024
      %42 = vsyncadd [#allocation5], %s41
      %s43 = sshll.u32 [#allocation6], 4
      %s44 = int_to_ptr.vmem [resolvable:$true] %s43
      %49 = dma.hbm_to_vmem [thread:$0]  %s2, 1024, %s44, [#allocation5], 64, 64, 4
    $region13: #{attention_forward.1} parent=1 // pred_fallthru
      _
    // Predicated region
    $region14: #{attention_forward.1} parent=1 // pred_check
      _
    $region15: #{attention_forward.1} parent=1 // pred_check_branch
      %51 = sbr.rel (0) target = $region17
    $region16: #{attention_forward.1} parent=1 // pred_region
      %s53 = ssub.s32 1024, 1024
      %54 = vsyncadd [#allocation8], %s53
      %s55 = sshll.u32 [#allocation7], 4
      %s56 = int_to_ptr.vmem [resolvable:$true] %s55
      %61 = dma.hbm_to_vmem [thread:$0]  %s3, 1024, %s56, [#allocation8], 64, 64, 4
    $region17: #{attention_forward.1} parent=1 // pred_fallthru
      _
    // Predicated region
    $region18: #{attention_forward.1} parent=1 // pred_check
      _
    $region19: #{attention_forward.1} parent=1 // pred_check_branch
      %63 = sbr.rel (0) target = $region21
    $region20: #{attention_forward.1} parent=1 // pred_region
      _
    $region21: #{attention_forward.1} parent=1 // pred_fallthru
      _
    // Predicated region
    $region22: #{attention_forward.1} parent=1 // pred_check
      _
    $region23: #{attention_forward.1} parent=1 // pred_check_branch
      %65 = sbr.rel (0) target = $region25
    $region24: #{attention_forward.1} parent=1 // pred_region
      _
    $region25: #{attention_forward.1} parent=1 // pred_fallthru
      _
    // Predicated region
    $region26: #{attention_forward.1} parent=1 // pred_check
      _
    $region27: #{attention_forward.1} parent=1 // pred_check_branch
      %67 = sbr.rel (0) target = $region29
    $region28: #{attention_forward.1} parent=1 // pred_region
      %68 = dma.done [#allocation3], 384
    $region29: #{attention_forward.1} parent=1 // pred_fallthru
      _
    // Predicated region
    $region30: #{attention_forward.1} parent=1 // pred_check
      _
    $region31: #{attention_forward.1} parent=1 // pred_check_branch
      %70 = sbr.rel (0) target = $region33
    $region32: #{attention_forward.1} parent=1 // pred_region
      %71 = dma.done [#allocation5], 3072
    $region33: #{attention_forward.1} parent=1 // pred_fallthru
      _
    // Predicated region
    $region34: #{attention_forward.1} parent=1 // pred_check
      _
    $region35: #{attention_forward.1} parent=1 // pred_check_branch
      %73 = sbr.rel (0) target = $region37
    $region36: #{attention_forward.1} parent=1 // pred_region
      %74 = dma.done [#allocation5], 1024
    $region37: #{attention_forward.1} parent=1 // pred_fallthru
      _
    // Predicated region
    $region38: #{attention_forward.1} parent=1 // pred_check
      _
    $region39: #{attention_forward.1} parent=1 // pred_check_branch
      %76 = sbr.rel (0) target = $region41
    $region40: #{attention_forward.1} parent=1 // pred_region
      %77 = dma.done [#allocation8], 1024
    $region41: #{attention_forward.1} parent=1 // pred_fallthru
      _
    %v79 = vld [vmem:[#allocation2] sm:$0xff]
    %v80 = vld [vmem:[#allocation2 + $0x8] sm:$0xff]
    %v81 = vld [vmem:[#allocation2 + $0x10] sm:$0xff]
    %v82 = vpack.c.bf16 %v80, %v79
    %v83 = vpack.c.bf16 %v81, %v81
    %v84 = vld [vmem:[#allocation6] sm:$0xf]
    %v85 = vld [vmem:[#allocation6 + $0x4] sm:$0xf]
    %v86 = vld [vmem:[#allocation6 + $0x8] sm:$0xf]
    %v87 = vld [vmem:[#allocation6 + $0xc] sm:$0xf]
    %v88 = vld [vmem:[#allocation6 + $0x10] sm:$0xf]
    %v89 = vld [vmem:[#allocation6 + $0x14] sm:$0xf]
    %v90 = vld [vmem:[#allocation6 + $0x18] sm:$0xf]
    %v91 = vld [vmem:[#allocation6 + $0x1c] sm:$0xf]
    %v92 = vld [vmem:[#allocation6 + $0x20] sm:$0xf]
    %v93 = vld [vmem:[#allocation6 + $0x24] sm:$0xf]
    %v94 = vld [vmem:[#allocation6 + $0x28] sm:$0xf]
    %v95 = vld [vmem:[#allocation6 + $0x2c] sm:$0xf]
    %v96 = vld [vmem:[#allocation6 + $0x30] sm:$0xf]
    %v97 = vld [vmem:[#allocation6 + $0x34] sm:$0xf]
    %v98 = vld [vmem:[#allocation6 + $0x38] sm:$0xf]
    %v99 = vld [vmem:[#allocation6 + $0x3c] sm:$0xf]
    %v100 = vld [vmem:[%s4] sm:$0x1]
    %v102 = vlaneseq
    %v103 = vshrl.u32 %v102, 7
    %v104 = vsub.s32 0, %v103
    %v105 = vrot.slane %v100, %v104
    %v123 = vunpack.c.l.b16 %v84
    %v124 = vunpack.c.l.b16 %v85
    %v125 = vunpack.c.l.b16 %v86
    %v126 = vunpack.c.l.b16 %v87
    %v127 = vunpack.c.l.b16 %v88
    %v128 = vunpack.c.l.b16 %v89
    %v129 = vunpack.c.l.b16 %v90
    %v130 = vunpack.c.l.b16 %v91
    %v131 = vunpack.c.l.b16 %v92
    %v132 = vunpack.c.l.b16 %v93
    %v133 = vunpack.c.l.b16 %v94
    %v134 = vunpack.c.l.b16 %v95
    %v135 = vunpack.c.l.b16 %v96
    %v136 = vunpack.c.l.b16 %v97
    %v137 = vunpack.c.l.b16 %v98
    %v138 = vunpack.c.l.b16 %v99
    %v139 = vpack.c.b16 %v124, %v123
    %v140 = vpack.c.b16 %v126, %v125
    %v141 = vpack.c.b16 %v128, %v127
    %v142 = vpack.c.b16 %v130, %v129
    %v143 = vpack.c.b16 %v132, %v131
    %v144 = vpack.c.b16 %v134, %v133
    %v145 = vpack.c.b16 %v136, %v135
    %v146 = vpack.c.b16 %v138, %v137
    %155 = vmatprep.subr.bf16.mxu0 0
    %156 = vmatpush1.bf16.msra.mxu0 %v139
    %157 = vmatprep.subr.bf16.mxu0 0
    %158 = vmatpush1.bf16.msra.mxu0 %v140
    %159 = vmatprep.subr.bf16.mxu0 0
    %160 = vmatpush1.bf16.msra.mxu0 %v141
    %161 = vmatprep.subr.bf16.mxu0 0
    %162 = vmatpush1.bf16.msra.mxu0 %v142
    %163 = vmatprep.subr.bf16.mxu0 0
    %164 = vmatpush1.bf16.msra.mxu0 %v143
    %165 = vmatprep.subr.bf16.mxu0 0
    %166 = vmatpush1.bf16.msra.mxu0 %v144
    %167 = vmatprep.subr.bf16.mxu0 0
    %168 = vmatpush1.bf16.msra.mxu0 %v145
    %169 = vmatprep.subr.bf16.mxu0 0
    %170 = vmatpush1.bf16.msra.mxu0 %v146
    %171 = vmatprep.subr.bf16.mxu0 0
    %172 = vmatpush1.bf16.msra.mxu0 0
    %173 = vmatprep.subr.bf16.mxu0 0
    %174 = vmatpush1.bf16.msra.mxu0 0
    %175 = vmatprep.subr.bf16.mxu0 0
    %176 = vmatpush1.bf16.msra.mxu0 0
    %177 = vmatprep.subr.bf16.mxu0 0
    %178 = vmatpush1.bf16.msra.mxu0 0
    %179 = vmatprep.subr.bf16.mxu0 0
    %180 = vmatpush1.bf16.msra.mxu0 0
    %181 = vmatprep.subr.bf16.mxu0 0
    %182 = vmatpush1.bf16.msra.mxu0 0
    %183 = vmatprep.subr.bf16.mxu0 0
    %184 = vmatpush1.bf16.msra.mxu0 0
    %185 = vmatprep.subr.bf16.mxu0 0
    %186 = vmatpush1.bf16.msra.mxu0 0
    %187 = vmatprep.mubr.bf16.mxu0 0
    %188 = vmatmul.mubr.bf16.gmra.mrb[0].mxu0 %v82
    %v189 = vpop.f32.mrb[0].mxu0
    %v190 = vadd.f32 %v105, %v189
    %v191 = vpop.f32.mrb[0].mxu0
    %v192 = vpop.f32.mrb[0].mxu0
    %v193 = vadd.f32 %v105, %v192
    %v194 = vpop.f32.mrb[0].mxu0
    %195 = vmatprep.mubr.bf16.mxu0 0
    %196 = vmatmul.mubr.bf16.gmra.mrb[0].mxu0 %v83
    %v197 = vpop.f32.mrb[0].mxu0
    %v198 = vadd.f32 %v105, %v197
    %v199 = vpop.f32.mrb[0].mxu0
    %v200 = vpop.f32.mrb[0].mxu0
    %v201 = vpop.f32.mrb[0].mxu0
    %202 = vdwg.mxu0
    %v203 = vld [vmem:[#allocation4] sm:$0xf]
    %v204 = vld [vmem:[#allocation4 + $0x4] sm:$0xf]
    %v205 = vld [vmem:[#allocation4 + $0x8] sm:$0xf]
    %v206 = vld [vmem:[#allocation4 + $0xc] sm:$0xf]
    %v207 = vld [vmem:[#allocation4 + $0x10] sm:$0xf]
    %v208 = vld [vmem:[#allocation4 + $0x14] sm:$0xf]
    %v209 = vld [vmem:[#allocation4 + $0x18] sm:$0xf]
    %v210 = vld [vmem:[#allocation4 + $0x1c] sm:$0xf]
    %v211 = vld [vmem:[#allocation4 + $0x20] sm:$0xf]
    %v212 = vld [vmem:[#allocation4 + $0x24] sm:$0xf]
    %v213 = vld [vmem:[#allocation4 + $0x28] sm:$0xf]
    %v214 = vld [vmem:[#allocation4 + $0x2c] sm:$0xf]
    %v215 = vld [vmem:[#allocation4 + $0x30] sm:$0xf]
    %v216 = vld [vmem:[#allocation4 + $0x34] sm:$0xf]
    %v217 = vld [vmem:[#allocation4 + $0x38] sm:$0xf]
    %v218 = vld [vmem:[#allocation4 + $0x3c] sm:$0xf]
    %v219 = vld [vmem:[#allocation4 + $0x40] sm:$0xf]
    %v220 = vld [vmem:[#allocation4 + $0x44] sm:$0xf]
    %v221 = vld [vmem:[#allocation4 + $0x48] sm:$0xf]
    %v222 = vld [vmem:[#allocation4 + $0x4c] sm:$0xf]
    %v223 = vld [vmem:[#allocation4 + $0x50] sm:$0xf]
    %v224 = vld [vmem:[#allocation4 + $0x54] sm:$0xf]
    %v225 = vld [vmem:[#allocation4 + $0x58] sm:$0xf]
    %v226 = vld [vmem:[#allocation4 + $0x5c] sm:$0xf]
    %v227 = vld [vmem:[#allocation4 + $0x60] sm:$0xf]
    %v228 = vld [vmem:[#allocation4 + $0x64] sm:$0xf]
    %v229 = vld [vmem:[#allocation4 + $0x68] sm:$0xf]
    %v230 = vld [vmem:[#allocation4 + $0x6c] sm:$0xf]
    %v231 = vld [vmem:[#allocation4 + $0x70] sm:$0xf]
    %v232 = vld [vmem:[#allocation4 + $0x74] sm:$0xf]
    %v233 = vld [vmem:[#allocation4 + $0x78] sm:$0xf]
    %v234 = vld [vmem:[#allocation4 + $0x7c] sm:$0xf]
    %v235 = vld [vmem:[#allocation4 + $0x80] sm:$0xf]
    %v236 = vld [vmem:[#allocation4 + $0x84] sm:$0xf]
    %v237 = vld [vmem:[#allocation4 + $0x88] sm:$0xf]
    %v238 = vld [vmem:[#allocation4 + $0x8c] sm:$0xf]
    %v239 = vld [vmem:[#allocation4 + $0x90] sm:$0xf]
    %v240 = vld [vmem:[#allocation4 + $0x94] sm:$0xf]
    %v241 = vld [vmem:[#allocation4 + $0x98] sm:$0xf]
    %v242 = vld [vmem:[#allocation4 + $0x9c] sm:$0xf]
    %v243 = vld [vmem:[#allocation4 + $0xa0] sm:$0xf]
    %v244 = vld [vmem:[#allocation4 + $0xa4] sm:$0xf]
    %v245 = vld [vmem:[#allocation4 + $0xa8] sm:$0xf]
    %v246 = vld [vmem:[#allocation4 + $0xac] sm:$0xf]
    %v247 = vld [vmem:[#allocation4 + $0xb0] sm:$0xf]
    %v248 = vld [vmem:[#allocation4 + $0xb4] sm:$0xf]
    %v249 = vld [vmem:[#allocation4 + $0xb8] sm:$0xf]
    %v250 = vld [vmem:[#allocation4 + $0xbc] sm:$0xf]
    %v251 = vld [vmem:[#allocation7] sm:$0xf]
    %v252 = vld [vmem:[#allocation7 + $0x4] sm:$0xf]
    %v253 = vld [vmem:[#allocation7 + $0x8] sm:$0xf]
    %v254 = vld [vmem:[#allocation7 + $0xc] sm:$0xf]
    %v255 = vld [vmem:[#allocation7 + $0x10] sm:$0xf]
    %v256 = vld [vmem:[#allocation7 + $0x14] sm:$0xf]
    %v257 = vld [vmem:[#allocation7 + $0x18] sm:$0xf]
    %v258 = vld [vmem:[#allocation7 + $0x1c] sm:$0xf]
    %v259 = vld [vmem:[#allocation7 + $0x20] sm:$0xf]
    %v260 = vld [vmem:[#allocation7 + $0x24] sm:$0xf]
    %v261 = vld [vmem:[#allocation7 + $0x28] sm:$0xf]
    %v262 = vld [vmem:[#allocation7 + $0x2c] sm:$0xf]
    %v263 = vld [vmem:[#allocation7 + $0x30] sm:$0xf]
    %v264 = vld [vmem:[#allocation7 + $0x34] sm:$0xf]
    %v265 = vld [vmem:[#allocation7 + $0x38] sm:$0xf]
    %v266 = vld [vmem:[#allocation7 + $0x3c] sm:$0xf]
    %v315 = vunpack.c.l.b16 %v203
    %v316 = vunpack.c.l.b16 %v204
    %v317 = vunpack.c.l.b16 %v205
    %v318 = vunpack.c.l.b16 %v206
    %v319 = vunpack.c.l.b16 %v207
    %v320 = vunpack.c.l.b16 %v208
    %v321 = vunpack.c.l.b16 %v209
    %v322 = vunpack.c.l.b16 %v210
    %v323 = vunpack.c.l.b16 %v211
    %v324 = vunpack.c.l.b16 %v212
    %v325 = vunpack.c.l.b16 %v213
    %v326 = vunpack.c.l.b16 %v214
    %v327 = vunpack.c.l.b16 %v215
    %v328 = vunpack.c.l.b16 %v216
    %v329 = vunpack.c.l.b16 %v217
    %v330 = vunpack.c.l.b16 %v218
    %v331 = vunpack.c.l.b16 %v219
    %v332 = vunpack.c.l.b16 %v220
    %v333 = vunpack.c.l.b16 %v221
    %v334 = vunpack.c.l.b16 %v222
    %v335 = vunpack.c.l.b16 %v223
    %v336 = vunpack.c.l.b16 %v224
    %v337 = vunpack.c.l.b16 %v225
    %v338 = vunpack.c.l.b16 %v226
    %v339 = vunpack.c.l.b16 %v227
    %v340 = vunpack.c.l.b16 %v228
    %v341 = vunpack.c.l.b16 %v229
    %v342 = vunpack.c.l.b16 %v230
    %v343 = vunpack.c.l.b16 %v231
    %v344 = vunpack.c.l.b16 %v232
    %v345 = vunpack.c.l.b16 %v233
    %v346 = vunpack.c.l.b16 %v234
    %v347 = vunpack.c.l.b16 %v235
    %v348 = vunpack.c.l.b16 %v236
    %v349 = vunpack.c.l.b16 %v237
    %v350 = vunpack.c.l.b16 %v238
    %v351 = vunpack.c.l.b16 %v239
    %v352 = vunpack.c.l.b16 %v240
    %v353 = vunpack.c.l.b16 %v241
    %v354 = vunpack.c.l.b16 %v242
    %v355 = vunpack.c.l.b16 %v243
    %v356 = vunpack.c.l.b16 %v244
    %v357 = vunpack.c.l.b16 %v245
    %v358 = vunpack.c.l.b16 %v246
    %v359 = vunpack.c.l.b16 %v247
    %v360 = vunpack.c.l.b16 %v248
    %v361 = vunpack.c.l.b16 %v249
    %v362 = vunpack.c.l.b16 %v250
    %v363 = vpack.c.b16 %v316, %v315
    %v364 = vpack.c.b16 %v318, %v317
    %v365 = vpack.c.b16 %v320, %v319
    %v366 = vpack.c.b16 %v322, %v321
    %v367 = vpack.c.b16 %v324, %v323
    %v368 = vpack.c.b16 %v326, %v325
    %v369 = vpack.c.b16 %v328, %v327
    %v370 = vpack.c.b16 %v330, %v329
    %v371 = vpack.c.b16 %v332, %v331
    %v372 = vpack.c.b16 %v334, %v333
    %v373 = vpack.c.b16 %v336, %v335
    %v374 = vpack.c.b16 %v338, %v337
    %v375 = vpack.c.b16 %v340, %v339
    %v376 = vpack.c.b16 %v342, %v341
    %v377 = vpack.c.b16 %v344, %v343
    %v378 = vpack.c.b16 %v346, %v345
    %v379 = vpack.c.b16 %v348, %v347
    %v380 = vpack.c.b16 %v350, %v349
    %v381 = vpack.c.b16 %v352, %v351
    %v382 = vpack.c.b16 %v354, %v353
    %v383 = vpack.c.b16 %v356, %v355
    %v384 = vpack.c.b16 %v358, %v357
    %v385 = vpack.c.b16 %v360, %v359
    %v386 = vpack.c.b16 %v362, %v361
    %v427 = vunpack.c.l.b16 %v251
    %v428 = vunpack.c.l.b16 %v252
    %v429 = vunpack.c.l.b16 %v253
    %v430 = vunpack.c.l.b16 %v254
    %v431 = vunpack.c.l.b16 %v255
    %v432 = vunpack.c.l.b16 %v256
    %v433 = vunpack.c.l.b16 %v257
    %v434 = vunpack.c.l.b16 %v258
    %v435 = vunpack.c.l.b16 %v259
    %v436 = vunpack.c.l.b16 %v260
    %v437 = vunpack.c.l.b16 %v261
    %v438 = vunpack.c.l.b16 %v262
    %v439 = vunpack.c.l.b16 %v263
    %v440 = vunpack.c.l.b16 %v264
    %v441 = vunpack.c.l.b16 %v265
    %v442 = vunpack.c.l.b16 %v266
    %v443 = vpack.c.b16 %v428, %v427
    %v444 = vpack.c.b16 %v430, %v429
    %v445 = vpack.c.b16 %v432, %v431
    %v446 = vpack.c.b16 %v434, %v433
    %v447 = vpack.c.b16 %v436, %v435
    %v448 = vpack.c.b16 %v438, %v437
    %v449 = vpack.c.b16 %v440, %v439
    %v450 = vpack.c.b16 %v442, %v441
    %459 = vmatprep.subr.bf16.mxu0 0
    %460 = vmatpush1.bf16.msra.mxu0 %v443
    %461 = vmatprep.subr.bf16.mxu0 0
    %462 = vmatpush1.bf16.msra.mxu0 %v444
    %463 = vmatprep.subr.bf16.mxu0 0
    %464 = vmatpush1.bf16.msra.mxu0 %v445
    %465 = vmatprep.subr.bf16.mxu0 0
    %466 = vmatpush1.bf16.msra.mxu0 %v446
    %467 = vmatprep.subr.bf16.mxu0 0
    %468 = vmatpush1.bf16.msra.mxu0 %v447
    %469 = vmatprep.subr.bf16.mxu0 0
    %470 = vmatpush1.bf16.msra.mxu0 %v448
    %471 = vmatprep.subr.bf16.mxu0 0
    %472 = vmatpush1.bf16.msra.mxu0 %v449
    %473 = vmatprep.subr.bf16.mxu0 0
    %474 = vmatpush1.bf16.msra.mxu0 %v450
    %475 = vmatprep.subr.bf16.mxu0 0
    %476 = vmatpush1.bf16.msra.mxu0 0
    %477 = vmatprep.subr.bf16.mxu0 0
    %478 = vmatpush1.bf16.msra.mxu0 0
    %479 = vmatprep.subr.bf16.mxu0 0
    %480 = vmatpush1.bf16.msra.mxu0 0
    %481 = vmatprep.subr.bf16.mxu0 0
    %482 = vmatpush1.bf16.msra.mxu0 0
    %483 = vmatprep.subr.bf16.mxu0 0
    %484 = vmatpush1.bf16.msra.mxu0 0
    %485 = vmatprep.subr.bf16.mxu0 0
    %486 = vmatpush1.bf16.msra.mxu0 0
    %487 = vmatprep.subr.bf16.mxu0 0
    %488 = vmatpush1.bf16.msra.mxu0 0
    %489 = vmatprep.subr.bf16.mxu0 0
    %490 = vmatpush1.bf16.msra.mxu0 0
    %491 = vmatprep.mubr.bf16.mxu0 0
    %492 = vmatmul.mubr.bf16.gmra.mrb[0].mxu0 %v363
    %v493 = vpop.f32.mrb[0].mxu0
    %v494 = vadd.f32 0.0, %v493
    %v495 = vpop.f32.mrb[0].mxu0
    %v496 = vpop.f32.mrb[0].mxu0
    %v497 = vadd.f32 0.0, %v496
    %v498 = vpop.f32.mrb[0].mxu0
    %499 = vmatprep.mubr.bf16.mxu0 0
    %500 = vmatmul.mubr.bf16.gmra.mrb[0].mxu0 %v364
    %v501 = vpop.f32.mrb[0].mxu0
    %v502 = vadd.f32 0.0, %v501
    %v503 = vpop.f32.mrb[0].mxu0
    %v504 = vpop.f32.mrb[0].mxu0
    %v505 = vadd.f32 0.0, %v504
    %v506 = vpop.f32.mrb[0].mxu0
    %507 = vmatprep.mubr.bf16.mxu0 0
    %508 = vmatmul.mubr.bf16.gmra.mrb[0].mxu0 %v365
    %v509 = vpop.f32.mrb[0].mxu0
    %v510 = vadd.f32 0.0, %v509
    %v511 = vpop.f32.mrb[0].mxu0
    %v512 = vpop.f32.mrb[0].mxu0
    %v513 = vadd.f32 0.0, %v512
    %v514 = vpop.f32.mrb[0].mxu0
    %515 = vmatprep.mubr.bf16.mxu0 0
    %516 = vmatmul.mubr.bf16.gmra.mrb[0].mxu0 %v366
    %v517 = vpop.f32.mrb[0].mxu0
    %v518 = vadd.f32 0.0, %v517
    %v519 = vpop.f32.mrb[0].mxu0
    %v520 = vpop.f32.mrb[0].mxu0
    %v521 = vadd.f32 0.0, %v520
    %v522 = vpop.f32.mrb[0].mxu0
    %523 = vmatprep.mubr.bf16.mxu0 0
    %524 = vmatmul.mubr.bf16.gmra.mrb[0].mxu0 %v367
    %v525 = vpop.f32.mrb[0].mxu0
    %v526 = vadd.f32 0.0, %v525
    %v527 = vpop.f32.mrb[0].mxu0
    %v528 = vpop.f32.mrb[0].mxu0
    %v529 = vadd.f32 0.0, %v528
    %v530 = vpop.f32.mrb[0].mxu0
    %531 = vmatprep.mubr.bf16.mxu0 0
    %532 = vmatmul.mubr.bf16.gmra.mrb[0].mxu0 %v368
    %v533 = vpop.f32.mrb[0].mxu0
    %v534 = vadd.f32 0.0, %v533
    %v535 = vpop.f32.mrb[0].mxu0
    %v536 = vpop.f32.mrb[0].mxu0
    %v537 = vadd.f32 0.0, %v536
    %v538 = vpop.f32.mrb[0].mxu0
    %539 = vmatprep.mubr.bf16.mxu0 0
    %540 = vmatmul.mubr.bf16.gmra.mrb[0].mxu0 %v369
    %v541 = vpop.f32.mrb[0].mxu0
    %v542 = vadd.f32 0.0, %v541
    %v543 = vpop.f32.mrb[0].mxu0
    %v544 = vpop.f32.mrb[0].mxu0
    %v545 = vadd.f32 0.0, %v544
    %v546 = vpop.f32.mrb[0].mxu0
    %547 = vmatprep.mubr.bf16.mxu0 0
    %548 = vmatmul.mubr.bf16.gmra.mrb[0].mxu0 %v370
    %v549 = vpop.f32.mrb[0].mxu0
    %v550 = vadd.f32 0.0, %v549
    %v551 = vpop.f32.mrb[0].mxu0
    %v552 = vpop.f32.mrb[0].mxu0
    %v553 = vadd.f32 0.0, %v552
    %v554 = vpop.f32.mrb[0].mxu0
    %555 = vmatprep.mubr.bf16.mxu0 0
    %556 = vmatmul.mubr.bf16.gmra.mrb[0].mxu0 %v371
    %v557 = vpop.f32.mrb[0].mxu0
    %v558 = vadd.f32 0.0, %v557
    %v559 = vpop.f32.mrb[0].mxu0
    %v560 = vpop.f32.mrb[0].mxu0
    %v561 = vadd.f32 0.0, %v560
    %v562 = vpop.f32.mrb[0].mxu0
    %563 = vmatprep.mubr.bf16.mxu0 0
    %564 = vmatmul.mubr.bf16.gmra.mrb[0].mxu0 %v372
    %v565 = vpop.f32.mrb[0].mxu0
    %v566 = vadd.f32 0.0, %v565
    %v567 = vpop.f32.mrb[0].mxu0
    %v568 = vpop.f32.mrb[0].mxu0
    %v569 = vadd.f32 0.0, %v568
    %v570 = vpop.f32.mrb[0].mxu0
    %571 = vmatprep.mubr.bf16.mxu0 0
    %572 = vmatmul.mubr.bf16.gmra.mrb[0].mxu0 %v373
    %v573 = vpop.f32.mrb[0].mxu0
    %v574 = vadd.f32 0.0, %v573
    %v575 = vpop.f32.mrb[0].mxu0
    %v576 = vpop.f32.mrb[0].mxu0
    %v577 = vadd.f32 0.0, %v576
    %v578 = vpop.f32.mrb[0].mxu0
    %579 = vmatprep.mubr.bf16.mxu0 0
    %580 = vmatmul.mubr.bf16.gmra.mrb[0].mxu0 %v374
    %v581 = vpop.f32.mrb[0].mxu0
    %v582 = vadd.f32 0.0, %v581
    %v583 = vpop.f32.mrb[0].mxu0
    %v584 = vpop.f32.mrb[0].mxu0
    %v585 = vadd.f32 0.0, %v584
    %v586 = vpop.f32.mrb[0].mxu0
    %587 = vmatprep.mubr.bf16.mxu0 0
    %588 = vmatmul.mubr.bf16.gmra.mrb[0].mxu0 %v375
    %v589 = vpop.f32.mrb[0].mxu0
    %v590 = vadd.f32 0.0, %v589
    %v591 = vpop.f32.mrb[0].mxu0
    %v592 = vpop.f32.mrb[0].mxu0
    %v593 = vadd.f32 0.0, %v592
    %v594 = vpop.f32.mrb[0].mxu0
    %595 = vmatprep.mubr.bf16.mxu0 0
    %596 = vmatmul.mubr.bf16.gmra.mrb[0].mxu0 %v376
    %v597 = vpop.f32.mrb[0].mxu0
    %v598 = vadd.f32 0.0, %v597
    %v599 = vpop.f32.mrb[0].mxu0
    %v600 = vpop.f32.mrb[0].mxu0
    %v601 = vadd.f32 0.0, %v600
    %v602 = vpop.f32.mrb[0].mxu0
    %603 = vmatprep.mubr.bf16.mxu0 0
    %604 = vmatmul.mubr.bf16.gmra.mrb[0].mxu0 %v377
    %v605 = vpop.f32.mrb[0].mxu0
    %v606 = vadd.f32 0.0, %v605
    %v607 = vpop.f32.mrb[0].mxu0
    %v608 = vpop.f32.mrb[0].mxu0
    %v609 = vadd.f32 0.0, %v608
    %v610 = vpop.f32.mrb[0].mxu0
    %611 = vmatprep.mubr.bf16.mxu0 0
    %612 = vmatmul.mubr.bf16.gmra.mrb[0].mxu0 %v378
    %v613 = vpop.f32.mrb[0].mxu0
    %v614 = vadd.f32 0.0, %v613
    %v615 = vpop.f32.mrb[0].mxu0
    %v616 = vpop.f32.mrb[0].mxu0
    %v617 = vadd.f32 0.0, %v616
    %v618 = vpop.f32.mrb[0].mxu0
    %619 = vmatprep.mubr.bf16.mxu0 0
    %620 = vmatmul.mubr.bf16.gmra.mrb[0].mxu0 %v379
    %v621 = vpop.f32.mrb[0].mxu0
    %v622 = vadd.f32 0.0, %v621
    %v623 = vpop.f32.mrb[0].mxu0
    %v624 = vpop.f32.mrb[0].mxu0
    %v625 = vadd.f32 0.0, %v624
    %v626 = vpop.f32.mrb[0].mxu0
    %627 = vmatprep.mubr.bf16.mxu0 0
    %628 = vmatmul.mubr.bf16.gmra.mrb[0].mxu0 %v380
    %v629 = vpop.f32.mrb[0].mxu0
    %v630 = vadd.f32 0.0, %v629
    %v631 = vpop.f32.mrb[0].mxu0
    %v632 = vpop.f32.mrb[0].mxu0
    %v633 = vadd.f32 0.0, %v632
    %v634 = vpop.f32.mrb[0].mxu0
    %635 = vmatprep.mubr.bf16.mxu0 0
    %636 = vmatmul.mubr.bf16.gmra.mrb[0].mxu0 %v381
    %v637 = vpop.f32.mrb[0].mxu0
    %v638 = vadd.f32 0.0, %v637
    %v639 = vpop.f32.mrb[0].mxu0
    %v640 = vpop.f32.mrb[0].mxu0
    %v641 = vadd.f32 0.0, %v640
    %v642 = vpop.f32.mrb[0].mxu0
    %643 = vmatprep.mubr.bf16.mxu0 0
    %644 = vmatmul.mubr.bf16.gmra.mrb[0].mxu0 %v382
    %v645 = vpop.f32.mrb[0].mxu0
    %v646 = vadd.f32 0.0, %v645
    %v647 = vpop.f32.mrb[0].mxu0
    %v648 = vpop.f32.mrb[0].mxu0
    %v649 = vadd.f32 0.0, %v648
    %v650 = vpop.f32.mrb[0].mxu0
    %651 = vmatprep.mubr.bf16.mxu0 0
    %652 = vmatmul.mubr.bf16.gmra.mrb[0].mxu0 %v383
    %v653 = vpop.f32.mrb[0].mxu0
    %v654 = vadd.f32 0.0, %v653
    %v655 = vpop.f32.mrb[0].mxu0
    %v656 = vpop.f32.mrb[0].mxu0
    %v657 = vadd.f32 0.0, %v656
    %v658 = vpop.f32.mrb[0].mxu0
    %659 = vmatprep.mubr.bf16.mxu0 0
    %660 = vmatmul.mubr.bf16.gmra.mrb[0].mxu0 %v384
    %v661 = vpop.f32.mrb[0].mxu0
    %v662 = vadd.f32 0.0, %v661
    %v663 = vpop.f32.mrb[0].mxu0
    %v664 = vpop.f32.mrb[0].mxu0
    %v665 = vadd.f32 0.0, %v664
    %v666 = vpop.f32.mrb[0].mxu0
    %667 = vmatprep.mubr.bf16.mxu0 0
    %668 = vmatmul.mubr.bf16.gmra.mrb[0].mxu0 %v385
    %v669 = vpop.f32.mrb[0].mxu0
    %v670 = vadd.f32 0.0, %v669
    %v671 = vpop.f32.mrb[0].mxu0
    %v672 = vpop.f32.mrb[0].mxu0
    %v673 = vadd.f32 0.0, %v672
    %v674 = vpop.f32.mrb[0].mxu0
    %675 = vmatprep.mubr.bf16.mxu0 0
    %676 = vmatmul.mubr.bf16.gmra.mrb[0].mxu0 %v386
    %v677 = vpop.f32.mrb[0].mxu0
    %v678 = vadd.f32 0.0, %v677
    %v679 = vpop.f32.mrb[0].mxu0
    %v680 = vpop.f32.mrb[0].mxu0
    %v681 = vadd.f32 0.0, %v680
    %v682 = vpop.f32.mrb[0].mxu0
    %683 = vdwg.mxu0
    %v687 = vcombine.high %v190, %v190
    %v689 = vunpack.c.l.s4 1966171168
    %v690 = vunpack.c.0.s8 %v689
    %v691 = vlaneseq
    %v692 = vshrl.u32 %v691, 7
    %v693 = vsub.s32 %v690, %v692
    %v694 = vrot.slane %v190, %v693
    %v696 = vunpack.c.l.s4 1966171168
    %v697 = vunpack.c.0.s8 %v696
    %v698 = vlaneseq
    %v699 = vshrl.u32 %v698, 7
    %v700 = vsub.s32 %v697, %v699
    %v701 = vrot.slane %v687, %v700
    %v702 = vcombine.high %v694, %v694
    %v703 = vcombine.high %v701, %v701
    %v705 = vunpack.c.l.s4 1966171168
    %v706 = vunpack.c.0.s8 %v705
    %v707 = vlaneseq
    %v708 = vshrl.u32 %v707, 7
    %v709 = vsub.s32 %v706, %v708
    %v710 = vrot.slane %v694, %v709
    %v712 = vunpack.c.l.s4 1966171168
    %v713 = vunpack.c.0.s8 %v712
    %v714 = vlaneseq
    %v715 = vshrl.u32 %v714, 7
    %v716 = vsub.s32 %v713, %v715
    %v717 = vrot.slane %v701, %v716
    %v719 = vunpack.c.l.s4 1966171168
    %v720 = vunpack.c.0.s8 %v719
    %v721 = vlaneseq
    %v722 = vshrl.u32 %v721, 7
    %v723 = vsub.s32 %v720, %v722
    %v724 = vrot.slane %v702, %v723
    %v726 = vunpack.c.l.s4 1966171168
    %v727 = vunpack.c.0.s8 %v726
    %v728 = vlaneseq
    %v729 = vshrl.u32 %v728, 7
    %v730 = vsub.s32 %v727, %v729
    %v731 = vrot.slane %v703, %v730
    %v732 = vcombine.high %v710, %v710
    %v733 = vcombine.high %v717, %v717
    %v734 = vcombine.high %v724, %v724
    %v735 = vcombine.high %v731, %v731
    %v736 = vcombine.high %v193, %v193
    %v738 = vunpack.c.l.s4 1966171168
    %v739 = vunpack.c.0.s8 %v738
    %v740 = vlaneseq
    %v741 = vshrl.u32 %v740, 7
    %v742 = vsub.s32 %v739, %v741
    %v743 = vrot.slane %v193, %v742
    %v745 = vunpack.c.l.s4 1966171168
    %v746 = vunpack.c.0.s8 %v745
    %v747 = vlaneseq
    %v748 = vshrl.u32 %v747, 7
    %v749 = vsub.s32 %v746, %v748
    %v750 = vrot.slane %v736, %v749
    %v751 = vcombine.high %v743, %v743
    %v752 = vcombine.high %v750, %v750
    %v754 = vunpack.c.l.s4 1966171168
    %v755 = vunpack.c.0.s8 %v754
    %v756 = vlaneseq
    %v757 = vshrl.u32 %v756, 7
    %v758 = vsub.s32 %v755, %v757
    %v759 = vrot.slane %v743, %v758
    %v761 = vunpack.c.l.s4 1966171168
    %v762 = vunpack.c.0.s8 %v761
    %v763 = vlaneseq
    %v764 = vshrl.u32 %v763, 7
    %v765 = vsub.s32 %v762, %v764
    %v766 = vrot.slane %v750, %v765
    %v768 = vunpack.c.l.s4 1966171168
    %v769 = vunpack.c.0.s8 %v768
    %v770 = vlaneseq
    %v771 = vshrl.u32 %v770, 7
    %v772 = vsub.s32 %v769, %v771
    %v773 = vrot.slane %v751, %v772
    %v775 = vunpack.c.l.s4 1966171168
    %v776 = vunpack.c.0.s8 %v775
    %v777 = vlaneseq
    %v778 = vshrl.u32 %v777, 7
    %v779 = vsub.s32 %v776, %v778
    %v780 = vrot.slane %v752, %v779
    %v781 = vcombine.high %v759, %v759
    %v782 = vcombine.high %v766, %v766
    %v783 = vcombine.high %v773, %v773
    %v784 = vcombine.high %v780, %v780
    %v785 = vcombine.high %v198, %v198
    %v787 = vunpack.c.l.s4 1966171168
    %v788 = vunpack.c.0.s8 %v787
    %v789 = vlaneseq
    %v790 = vshrl.u32 %v789, 7
    %v791 = vsub.s32 %v788, %v790
    %v792 = vrot.slane %v198, %v791
    %v794 = vunpack.c.l.s4 1966171168
    %v795 = vunpack.c.0.s8 %v794
    %v796 = vlaneseq
    %v797 = vshrl.u32 %v796, 7
    %v798 = vsub.s32 %v795, %v797
    %v799 = vrot.slane %v785, %v798
    %v800 = vcombine.high %v792, %v792
    %v801 = vcombine.high %v799, %v799
    %v803 = vunpack.c.l.s4 1966171168
    %v804 = vunpack.c.0.s8 %v803
    %v805 = vlaneseq
    %v806 = vshrl.u32 %v805, 7
    %v807 = vsub.s32 %v804, %v806
    %v808 = vrot.slane %v792, %v807
    %v810 = vunpack.c.l.s4 1966171168
    %v811 = vunpack.c.0.s8 %v810
    %v812 = vlaneseq
    %v813 = vshrl.u32 %v812, 7
    %v814 = vsub.s32 %v811, %v813
    %v815 = vrot.slane %v799, %v814
    %v817 = vunpack.c.l.s4 1966171168
    %v818 = vunpack.c.0.s8 %v817
    %v819 = vlaneseq
    %v820 = vshrl.u32 %v819, 7
    %v821 = vsub.s32 %v818, %v820
    %v822 = vrot.slane %v800, %v821
    %v824 = vunpack.c.l.s4 1966171168
    %v825 = vunpack.c.0.s8 %v824
    %v826 = vlaneseq
    %v827 = vshrl.u32 %v826, 7
    %v828 = vsub.s32 %v825, %v827
    %v829 = vrot.slane %v801, %v828
    %v830 = vcombine.high %v808, %v808
    %v831 = vcombine.high %v815, %v815
    %v832 = vcombine.high %v822, %v822
    %v833 = vcombine.high %v829, %v829
    %v834 = vlaneseq
    %v835 = vshrl.u32 %v834, 7
    %v836 = vsub.s32 0, %v835
    %v837 = vrot.slane %v710, %v836
    %v838 = vlaneseq
    %v839 = vshrl.u32 %v838, 7
    %v840 = vsub.s32 0, %v839
    %v841 = vrot.slane %v724, %v840
    %v842 = vlaneseq
    %v843 = vshrl.u32 %v842, 7
    %v844 = vsub.s32 0, %v843
    %v845 = vrot.slane %v732, %v844
    %v846 = vlaneseq
    %v847 = vshrl.u32 %v846, 7
    %v848 = vsub.s32 0, %v847
    %v849 = vrot.slane %v734, %v848
    %v850 = vlaneseq
    %v851 = vshrl.u32 %v850, 7
    %v852 = vsub.s32 0, %v851
    %v853 = vrot.slane %v717, %v852
    %v854 = vlaneseq
    %v855 = vshrl.u32 %v854, 7
    %v856 = vsub.s32 0, %v855
    %v857 = vrot.slane %v731, %v856
    %v858 = vlaneseq
    %v859 = vshrl.u32 %v858, 7
    %v860 = vsub.s32 0, %v859
    %v861 = vrot.slane %v733, %v860
    %v862 = vlaneseq
    %v863 = vshrl.u32 %v862, 7
    %v864 = vsub.s32 0, %v863
    %v865 = vrot.slane %v735, %v864
    %v866 = vlaneseq
    %v867 = vshrl.u32 %v866, 7
    %v868 = vsub.s32 0, %v867
    %v869 = vrot.slane %v759, %v868
    %v870 = vlaneseq
    %v871 = vshrl.u32 %v870, 7
    %v872 = vsub.s32 0, %v871
    %v873 = vrot.slane %v773, %v872
    %v874 = vlaneseq
    %v875 = vshrl.u32 %v874, 7
    %v876 = vsub.s32 0, %v875
    %v877 = vrot.slane %v781, %v876
    %v878 = vlaneseq
    %v879 = vshrl.u32 %v878, 7
    %v880 = vsub.s32 0, %v879
    %v881 = vrot.slane %v783, %v880
    %v882 = vlaneseq
    %v883 = vshrl.u32 %v882, 7
    %v884 = vsub.s32 0, %v883
    %v885 = vrot.slane %v766, %v884
    %v886 = vlaneseq
    %v887 = vshrl.u32 %v886, 7
    %v888 = vsub.s32 0, %v887
    %v889 = vrot.slane %v780, %v888
    %v890 = vlaneseq
    %v891 = vshrl.u32 %v890, 7
    %v892 = vsub.s32 0, %v891
    %v893 = vrot.slane %v782, %v892
    %v894 = vlaneseq
    %v895 = vshrl.u32 %v894, 7
    %v896 = vsub.s32 0, %v895
    %v897 = vrot.slane %v784, %v896
    %v898 = vlaneseq
    %v899 = vshrl.u32 %v898, 7
    %v900 = vsub.s32 0, %v899
    %v901 = vrot.slane %v808, %v900
    %v902 = vlaneseq
    %v903 = vshrl.u32 %v902, 7
    %v904 = vsub.s32 0, %v903
    %v905 = vrot.slane %v822, %v904
    %v906 = vlaneseq
    %v907 = vshrl.u32 %v906, 7
    %v908 = vsub.s32 0, %v907
    %v909 = vrot.slane %v830, %v908
    %v910 = vlaneseq
    %v911 = vshrl.u32 %v910, 7
    %v912 = vsub.s32 0, %v911
    %v913 = vrot.slane %v832, %v912
    %v914 = vlaneseq
    %v915 = vshrl.u32 %v914, 7
    %v916 = vsub.s32 0, %v915
    %v917 = vrot.slane %v815, %v916
    %v918 = vlaneseq
    %v919 = vshrl.u32 %v918, 7
    %v920 = vsub.s32 0, %v919
    %v921 = vrot.slane %v829, %v920
    %v922 = vlaneseq
    %v923 = vshrl.u32 %v922, 7
    %v924 = vsub.s32 0, %v923
    %v925 = vrot.slane %v831, %v924
    %v926 = vlaneseq
    %v927 = vshrl.u32 %v926, 7
    %v928 = vsub.s32 0, %v927
    %v929 = vrot.slane %v833, %v928
    %v954 = vadd.f32 %v494, %v837
    %v955 = vadd.f32 %v497, %v837
    %v956 = vadd.f32 %v502, %v841
    %v957 = vadd.f32 %v505, %v841
    %v958 = vadd.f32 %v510, %v845
    %v959 = vadd.f32 %v513, %v845
    %v960 = vadd.f32 %v518, %v849
    %v961 = vadd.f32 %v521, %v849
    %v962 = vadd.f32 %v526, %v853
    %v963 = vadd.f32 %v529, %v853
    %v964 = vadd.f32 %v534, %v857
    %v965 = vadd.f32 %v537, %v857
    %v966 = vadd.f32 %v542, %v861
    %v967 = vadd.f32 %v545, %v861
    %v968 = vadd.f32 %v550, %v865
    %v969 = vadd.f32 %v553, %v865
    %v970 = vadd.f32 %v558, %v869
    %v971 = vadd.f32 %v561, %v869
    %v972 = vadd.f32 %v566, %v873
    %v973 = vadd.f32 %v569, %v873
    %v974 = vadd.f32 %v574, %v877
    %v975 = vadd.f32 %v577, %v877
    %v976 = vadd.f32 %v582, %v881
    %v977 = vadd.f32 %v585, %v881
    %v978 = vadd.f32 %v590, %v885
    %v979 = vadd.f32 %v593, %v885
    %v980 = vadd.f32 %v598, %v889
    %v981 = vadd.f32 %v601, %v889
    %v982 = vadd.f32 %v606, %v893
    %v983 = vadd.f32 %v609, %v893
    %v984 = vadd.f32 %v614, %v897
    %v985 = vadd.f32 %v617, %v897
    %v986 = vadd.f32 %v622, %v901
    %v987 = vadd.f32 %v625, %v901
    %v988 = vadd.f32 %v630, %v905
    %v989 = vadd.f32 %v633, %v905
    %v990 = vadd.f32 %v638, %v909
    %v991 = vadd.f32 %v641, %v909
    %v992 = vadd.f32 %v646, %v913
    %v993 = vadd.f32 %v649, %v913
    %v994 = vadd.f32 %v654, %v917
    %v995 = vadd.f32 %v657, %v917
    %v996 = vadd.f32 %v662, %v921
    %v997 = vadd.f32 %v665, %v921
    %v998 = vadd.f32 %v670, %v925
    %v999 = vadd.f32 %v673, %v925
    %v1000 = vadd.f32 %v678, %v929
    %v1001 = vadd.f32 %v681, %v929
    %v1002 = vtanh.pop %v954
    %v1003 = vtanh.pop %v955
    %v1004 = vtanh.pop %v956
    %v1005 = vtanh.pop %v957
    %v1006 = vtanh.pop %v958
    %v1007 = vtanh.pop %v959
    %v1008 = vtanh.pop %v960
    %v1009 = vtanh.pop %v961
    %v1010 = vtanh.pop %v962
    %v1011 = vtanh.pop %v963
    %v1012 = vtanh.pop %v964
    %v1013 = vtanh.pop %v965
    %v1014 = vtanh.pop %v966
    %v1015 = vtanh.pop %v967
    %v1016 = vtanh.pop %v968
    %v1017 = vtanh.pop %v969
    %v1018 = vtanh.pop %v970
    %v1019 = vtanh.pop %v971
    %v1020 = vtanh.pop %v972
    %v1021 = vtanh.pop %v973
    %v1022 = vtanh.pop %v974
    %v1023 = vtanh.pop %v975
    %v1024 = vtanh.pop %v976
    %v1025 = vtanh.pop %v977
    %v1026 = vtanh.pop %v978
    %v1027 = vtanh.pop %v979
    %v1028 = vtanh.pop %v980
    %v1029 = vtanh.pop %v981
    %v1030 = vtanh.pop %v982
    %v1031 = vtanh.pop %v983
    %v1032 = vtanh.pop %v984
    %v1033 = vtanh.pop %v985
    %v1034 = vtanh.pop %v986
    %v1035 = vtanh.pop %v987
    %v1036 = vtanh.pop %v988
    %v1037 = vtanh.pop %v989
    %v1038 = vtanh.pop %v990
    %v1039 = vtanh.pop %v991
    %v1040 = vtanh.pop %v992
    %v1041 = vtanh.pop %v993
    %v1042 = vtanh.pop %v994
    %v1043 = vtanh.pop %v995
    %v1044 = vtanh.pop %v996
    %v1045 = vtanh.pop %v997
    %v1046 = vtanh.pop %v998
    %v1047 = vtanh.pop %v999
    %v1048 = vtanh.pop %v1000
    %v1049 = vtanh.pop %v1001
    %v1050 = vld [vmem:[%s5] sm:$0x1]
    %v1052 = vlaneseq
    %v1053 = vshrl.u32 %v1052, 7
    %v1054 = vsub.s32 0, %v1053
    %v1055 = vrot.slane %v1050, %v1054
    %v1057 = vmul.f32 %v1002, %v1055
    %v1058 = vmul.f32 %v1003, %v1055
    %v1059 = vmul.f32 %v1004, %v1055
    %v1060 = vmul.f32 %v1005, %v1055
    %v1061 = vmul.f32 %v1006, %v1055
    %v1062 = vmul.f32 %v1007, %v1055
    %v1063 = vmul.f32 %v1008, %v1055
    %v1064 = vmul.f32 %v1009, %v1055
    %v1065 = vmul.f32 %v1010, %v1055
    %v1066 = vmul.f32 %v1011, %v1055
    %v1067 = vmul.f32 %v1012, %v1055
    %v1068 = vmul.f32 %v1013, %v1055
    %v1069 = vmul.f32 %v1014, %v1055
    %v1070 = vmul.f32 %v1015, %v1055
    %v1071 = vmul.f32 %v1016, %v1055
    %v1072 = vmul.f32 %v1017, %v1055
    %v1073 = vmul.f32 %v1018, %v1055
    %v1074 = vmul.f32 %v1019, %v1055
    %v1075 = vmul.f32 %v1020, %v1055
    %v1076 = vmul.f32 %v1021, %v1055
    %v1077 = vmul.f32 %v1022, %v1055
    %v1078 = vmul.f32 %v1023, %v1055
    %v1079 = vmul.f32 %v1024, %v1055
    %v1080 = vmul.f32 %v1025, %v1055
    %v1081 = vmul.f32 %v1026, %v1055
    %v1082 = vmul.f32 %v1027, %v1055
    %v1083 = vmul.f32 %v1028, %v1055
    %v1084 = vmul.f32 %v1029, %v1055
    %v1085 = vmul.f32 %v1030, %v1055
    %v1086 = vmul.f32 %v1031, %v1055
    %v1087 = vmul.f32 %v1032, %v1055
    %v1088 = vmul.f32 %v1033, %v1055
    %v1089 = vmul.f32 %v1034, %v1055
    %v1090 = vmul.f32 %v1035, %v1055
    %v1091 = vmul.f32 %v1036, %v1055
    %v1092 = vmul.f32 %v1037, %v1055
    %v1093 = vmul.f32 %v1038, %v1055
    %v1094 = vmul.f32 %v1039, %v1055
    %v1095 = vmul.f32 %v1040, %v1055
    %v1096 = vmul.f32 %v1041, %v1055
    %v1097 = vmul.f32 %v1042, %v1055
    %v1098 = vmul.f32 %v1043, %v1055
    %v1099 = vmul.f32 %v1044, %v1055
    %v1100 = vmul.f32 %v1045, %v1055
    %v1101 = vmul.f32 %v1046, %v1055
    %v1102 = vmul.f32 %v1047, %v1055
    %v1103 = vmul.f32 %v1048, %v1055
    %v1104 = vmul.f32 %v1049, %v1055
    %1105 = vadd.xlane.f32.xlu0 %v1057
    %v1106 = vpop.xlane.xlu0 %1105
    %1107 = vadd.xlane.f32.xlu0 %v1058
    %v1108 = vpop.xlane.xlu0 %1107
    %1109 = vadd.xlane.f32.xlu0 %v1059
    %v1110 = vpop.xlane.xlu0 %1109
    %1111 = vadd.xlane.f32.xlu0 %v1060
    %v1112 = vpop.xlane.xlu0 %1111
    %1113 = vadd.xlane.f32.xlu0 %v1061
    %v1114 = vpop.xlane.xlu0 %1113
    %1115 = vadd.xlane.f32.xlu0 %v1062
    %v1116 = vpop.xlane.xlu0 %1115
    %1117 = vadd.xlane.f32.xlu0 %v1063
    %v1118 = vpop.xlane.xlu0 %1117
    %1119 = vadd.xlane.f32.xlu0 %v1064
    %v1120 = vpop.xlane.xlu0 %1119
    %1121 = vadd.xlane.f32.xlu0 %v1065
    %v1122 = vpop.xlane.xlu0 %1121
    %1123 = vadd.xlane.f32.xlu0 %v1066
    %v1124 = vpop.xlane.xlu0 %1123
    %1125 = vadd.xlane.f32.xlu0 %v1067
    %v1126 = vpop.xlane.xlu0 %1125
    %1127 = vadd.xlane.f32.xlu0 %v1068
    %v1128 = vpop.xlane.xlu0 %1127
    %1129 = vadd.xlane.f32.xlu0 %v1069
    %v1130 = vpop.xlane.xlu0 %1129
    %1131 = vadd.xlane.f32.xlu0 %v1070
    %v1132 = vpop.xlane.xlu0 %1131
    %1133 = vadd.xlane.f32.xlu0 %v1071
    %v1134 = vpop.xlane.xlu0 %1133
    %1135 = vadd.xlane.f32.xlu0 %v1072
    %v1136 = vpop.xlane.xlu0 %1135
    %1137 = vadd.xlane.f32.xlu0 %v1073
    %v1138 = vpop.xlane.xlu0 %1137
    %1139 = vadd.xlane.f32.xlu0 %v1074
    %v1140 = vpop.xlane.xlu0 %1139
    %1141 = vadd.xlane.f32.xlu0 %v1075
    %v1142 = vpop.xlane.xlu0 %1141
    %1143 = vadd.xlane.f32.xlu0 %v1076
    %v1144 = vpop.xlane.xlu0 %1143
    %1145 = vadd.xlane.f32.xlu0 %v1077
    %v1146 = vpop.xlane.xlu0 %1145
    %1147 = vadd.xlane.f32.xlu0 %v1078
    %v1148 = vpop.xlane.xlu0 %1147
    %1149 = vadd.xlane.f32.xlu0 %v1079
    %v1150 = vpop.xlane.xlu0 %1149
    %1151 = vadd.xlane.f32.xlu0 %v1080
    %v1152 = vpop.xlane.xlu0 %1151
    %1153 = vadd.xlane.f32.xlu0 %v1081
    %v1154 = vpop.xlane.xlu0 %1153
    %1155 = vadd.xlane.f32.xlu0 %v1082
    %v1156 = vpop.xlane.xlu0 %1155
    %1157 = vadd.xlane.f32.xlu0 %v1083
    %v1158 = vpop.xlane.xlu0 %1157
    %1159 = vadd.xlane.f32.xlu0 %v1084
    %v1160 = vpop.xlane.xlu0 %1159
    %1161 = vadd.xlane.f32.xlu0 %v1085
    %v1162 = vpop.xlane.xlu0 %1161
    %1163 = vadd.xlane.f32.xlu0 %v1086
    %v1164 = vpop.xlane.xlu0 %1163
    %1165 = vadd.xlane.f32.xlu0 %v1087
    %v1166 = vpop.xlane.xlu0 %1165
    %1167 = vadd.xlane.f32.xlu0 %v1088
    %v1168 = vpop.xlane.xlu0 %1167
    %1169 = vadd.xlane.f32.xlu0 %v1089
    %v1170 = vpop.xlane.xlu0 %1169
    %1171 = vadd.xlane.f32.xlu0 %v1090
    %v1172 = vpop.xlane.xlu0 %1171
    %1173 = vadd.xlane.f32.xlu0 %v1091
    %v1174 = vpop.xlane.xlu0 %1173
    %1175 = vadd.xlane.f32.xlu0 %v1092
    %v1176 = vpop.xlane.xlu0 %1175
    %1177 = vadd.xlane.f32.xlu0 %v1093
    %v1178 = vpop.xlane.xlu0 %1177
    %1179 = vadd.xlane.f32.xlu0 %v1094
    %v1180 = vpop.xlane.xlu0 %1179
    %1181 = vadd.xlane.f32.xlu0 %v1095
    %v1182 = vpop.xlane.xlu0 %1181
    %1183 = vadd.xlane.f32.xlu0 %v1096
    %v1184 = vpop.xlane.xlu0 %1183
    %1185 = vadd.xlane.f32.xlu0 %v1097
    %v1186 = vpop.xlane.xlu0 %1185
    %1187 = vadd.xlane.f32.xlu0 %v1098
    %v1188 = vpop.xlane.xlu0 %1187
    %1189 = vadd.xlane.f32.xlu0 %v1099
    %v1190 = vpop.xlane.xlu0 %1189
    %1191 = vadd.xlane.f32.xlu0 %v1100
    %v1192 = vpop.xlane.xlu0 %1191
    %1193 = vadd.xlane.f32.xlu0 %v1101
    %v1194 = vpop.xlane.xlu0 %1193
    %1195 = vadd.xlane.f32.xlu0 %v1102
    %v1196 = vpop.xlane.xlu0 %1195
    %1197 = vadd.xlane.f32.xlu0 %v1103
    %v1198 = vpop.xlane.xlu0 %1197
    %1199 = vadd.xlane.f32.xlu0 %v1104
    %v1200 = vpop.xlane.xlu0 %1199
    %v1249 = vlaneseq
    %v1250 = vand.u32 %v1249, 127
    %v1251 = vlaneseq
    %v1252 = vshrl.u32 %v1251, 7
    %v1253 = vsub.s32 %v1250, %v1252
    %v1254 = vrot.slane %v1106, %v1253
    %v1255 = vadd.s32 %v1250, 4294967288
    %v1256 = vlaneseq
    %v1257 = vshrl.u32 %v1256, 7
    %v1258 = vsub.s32 %v1255, %v1257
    %v1259 = vrot.slane %v1108, %v1258
    %vm1260 = vcmask 130112
    %v1261 = vsel %vm1260, %v1259, %v1254
    %v1262 = vlaneseq
    %v1263 = vshrl.u32 %v1262, 7
    %v1264 = vsub.s32 %v1250, %v1263
    %v1265 = vrot.slane %v1110, %v1264
    %v1266 = vlaneseq
    %v1267 = vshrl.u32 %v1266, 7
    %v1268 = vsub.s32 %v1255, %v1267
    %v1269 = vrot.slane %v1112, %v1268
    %v1270 = vsel %vm1260, %v1269, %v1265
    %v1271 = vlaneseq
    %v1272 = vshrl.u32 %v1271, 7
    %v1273 = vsub.s32 %v1250, %v1272
    %v1274 = vrot.slane %v1114, %v1273
    %v1275 = vlaneseq
    %v1276 = vshrl.u32 %v1275, 7
    %v1277 = vsub.s32 %v1255, %v1276
    %v1278 = vrot.slane %v1116, %v1277
    %v1279 = vsel %vm1260, %v1278, %v1274
    %v1280 = vlaneseq
    %v1281 = vshrl.u32 %v1280, 7
    %v1282 = vsub.s32 %v1250, %v1281
    %v1283 = vrot.slane %v1118, %v1282
    %v1284 = vlaneseq
    %v1285 = vshrl.u32 %v1284, 7
    %v1286 = vsub.s32 %v1255, %v1285
    %v1287 = vrot.slane %v1120, %v1286
    %v1288 = vsel %vm1260, %v1287, %v1283
    %v1289 = vlaneseq
    %v1290 = vshrl.u32 %v1289, 7
    %v1291 = vsub.s32 %v1250, %v1290
    %v1292 = vrot.slane %v1122, %v1291
    %v1293 = vlaneseq
    %v1294 = vshrl.u32 %v1293, 7
    %v1295 = vsub.s32 %v1255, %v1294
    %v1296 = vrot.slane %v1124, %v1295
    %v1297 = vsel %vm1260, %v1296, %v1292
    %v1298 = vlaneseq
    %v1299 = vshrl.u32 %v1298, 7
    %v1300 = vsub.s32 %v1250, %v1299
    %v1301 = vrot.slane %v1126, %v1300
    %v1302 = vlaneseq
    %v1303 = vshrl.u32 %v1302, 7
    %v1304 = vsub.s32 %v1255, %v1303
    %v1305 = vrot.slane %v1128, %v1304
    %v1306 = vsel %vm1260, %v1305, %v1301
    %v1307 = vlaneseq
    %v1308 = vshrl.u32 %v1307, 7
    %v1309 = vsub.s32 %v1250, %v1308
    %v1310 = vrot.slane %v1130, %v1309
    %v1311 = vlaneseq
    %v1312 = vshrl.u32 %v1311, 7
    %v1313 = vsub.s32 %v1255, %v1312
    %v1314 = vrot.slane %v1132, %v1313
    %v1315 = vsel %vm1260, %v1314, %v1310
    %v1316 = vlaneseq
    %v1317 = vshrl.u32 %v1316, 7
    %v1318 = vsub.s32 %v1250, %v1317
    %v1319 = vrot.slane %v1134, %v1318
    %v1320 = vlaneseq
    %v1321 = vshrl.u32 %v1320, 7
    %v1322 = vsub.s32 %v1255, %v1321
    %v1323 = vrot.slane %v1136, %v1322
    %v1324 = vsel %vm1260, %v1323, %v1319
    %v1325 = vlaneseq
    %v1326 = vshrl.u32 %v1325, 7
    %v1327 = vsub.s32 %v1250, %v1326
    %v1328 = vrot.slane %v1138, %v1327
    %v1329 = vlaneseq
    %v1330 = vshrl.u32 %v1329, 7
    %v1331 = vsub.s32 %v1255, %v1330
    %v1332 = vrot.slane %v1140, %v1331
    %v1333 = vsel %vm1260, %v1332, %v1328
    %v1334 = vlaneseq
    %v1335 = vshrl.u32 %v1334, 7
    %v1336 = vsub.s32 %v1250, %v1335
    %v1337 = vrot.slane %v1142, %v1336
    %v1338 = vlaneseq
    %v1339 = vshrl.u32 %v1338, 7
    %v1340 = vsub.s32 %v1255, %v1339
    %v1341 = vrot.slane %v1144, %v1340
    %v1342 = vsel %vm1260, %v1341, %v1337
    %v1343 = vlaneseq
    %v1344 = vshrl.u32 %v1343, 7
    %v1345 = vsub.s32 %v1250, %v1344
    %v1346 = vrot.slane %v1146, %v1345
    %v1347 = vlaneseq
    %v1348 = vshrl.u32 %v1347, 7
    %v1349 = vsub.s32 %v1255, %v1348
    %v1350 = vrot.slane %v1148, %v1349
    %v1351 = vsel %vm1260, %v1350, %v1346
    %v1352 = vlaneseq
    %v1353 = vshrl.u32 %v1352, 7
    %v1354 = vsub.s32 %v1250, %v1353
    %v1355 = vrot.slane %v1150, %v1354
    %v1356 = vlaneseq
    %v1357 = vshrl.u32 %v1356, 7
    %v1358 = vsub.s32 %v1255, %v1357
    %v1359 = vrot.slane %v1152, %v1358
    %v1360 = vsel %vm1260, %v1359, %v1355
    %v1361 = vlaneseq
    %v1362 = vshrl.u32 %v1361, 7
    %v1363 = vsub.s32 %v1250, %v1362
    %v1364 = vrot.slane %v1154, %v1363
    %v1365 = vlaneseq
    %v1366 = vshrl.u32 %v1365, 7
    %v1367 = vsub.s32 %v1255, %v1366
    %v1368 = vrot.slane %v1156, %v1367
    %v1369 = vsel %vm1260, %v1368, %v1364
    %v1370 = vlaneseq
    %v1371 = vshrl.u32 %v1370, 7
    %v1372 = vsub.s32 %v1250, %v1371
    %v1373 = vrot.slane %v1158, %v1372
    %v1374 = vlaneseq
    %v1375 = vshrl.u32 %v1374, 7
    %v1376 = vsub.s32 %v1255, %v1375
    %v1377 = vrot.slane %v1160, %v1376
    %v1378 = vsel %vm1260, %v1377, %v1373
    %v1379 = vlaneseq
    %v1380 = vshrl.u32 %v1379, 7
    %v1381 = vsub.s32 %v1250, %v1380
    %v1382 = vrot.slane %v1162, %v1381
    %v1383 = vlaneseq
    %v1384 = vshrl.u32 %v1383, 7
    %v1385 = vsub.s32 %v1255, %v1384
    %v1386 = vrot.slane %v1164, %v1385
    %v1387 = vsel %vm1260, %v1386, %v1382
    %v1388 = vlaneseq
    %v1389 = vshrl.u32 %v1388, 7
    %v1390 = vsub.s32 %v1250, %v1389
    %v1391 = vrot.slane %v1166, %v1390
    %v1392 = vlaneseq
    %v1393 = vshrl.u32 %v1392, 7
    %v1394 = vsub.s32 %v1255, %v1393
    %v1395 = vrot.slane %v1168, %v1394
    %v1396 = vsel %vm1260, %v1395, %v1391
    %v1397 = vlaneseq
    %v1398 = vshrl.u32 %v1397, 7
    %v1399 = vsub.s32 %v1250, %v1398
    %v1400 = vrot.slane %v1170, %v1399
    %v1401 = vlaneseq
    %v1402 = vshrl.u32 %v1401, 7
    %v1403 = vsub.s32 %v1255, %v1402
    %v1404 = vrot.slane %v1172, %v1403
    %v1405 = vsel %vm1260, %v1404, %v1400
    %v1406 = vlaneseq
    %v1407 = vshrl.u32 %v1406, 7
    %v1408 = vsub.s32 %v1250, %v1407
    %v1409 = vrot.slane %v1174, %v1408
    %v1410 = vlaneseq
    %v1411 = vshrl.u32 %v1410, 7
    %v1412 = vsub.s32 %v1255, %v1411
    %v1413 = vrot.slane %v1176, %v1412
    %v1414 = vsel %vm1260, %v1413, %v1409
    %v1415 = vlaneseq
    %v1416 = vshrl.u32 %v1415, 7
    %v1417 = vsub.s32 %v1250, %v1416
    %v1418 = vrot.slane %v1178, %v1417
    %v1419 = vlaneseq
    %v1420 = vshrl.u32 %v1419, 7
    %v1421 = vsub.s32 %v1255, %v1420
    %v1422 = vrot.slane %v1180, %v1421
    %v1423 = vsel %vm1260, %v1422, %v1418
    %v1424 = vlaneseq
    %v1425 = vshrl.u32 %v1424, 7
    %v1426 = vsub.s32 %v1250, %v1425
    %v1427 = vrot.slane %v1182, %v1426
    %v1428 = vlaneseq
    %v1429 = vshrl.u32 %v1428, 7
    %v1430 = vsub.s32 %v1255, %v1429
    %v1431 = vrot.slane %v1184, %v1430
    %v1432 = vsel %vm1260, %v1431, %v1427
    %v1433 = vlaneseq
    %v1434 = vshrl.u32 %v1433, 7
    %v1435 = vsub.s32 %v1250, %v1434
    %v1436 = vrot.slane %v1186, %v1435
    %v1437 = vlaneseq
    %v1438 = vshrl.u32 %v1437, 7
    %v1439 = vsub.s32 %v1255, %v1438
    %v1440 = vrot.slane %v1188, %v1439
    %v1441 = vsel %vm1260, %v1440, %v1436
    %v1442 = vlaneseq
    %v1443 = vshrl.u32 %v1442, 7
    %v1444 = vsub.s32 %v1250, %v1443
    %v1445 = vrot.slane %v1190, %v1444
    %v1446 = vlaneseq
    %v1447 = vshrl.u32 %v1446, 7
    %v1448 = vsub.s32 %v1255, %v1447
    %v1449 = vrot.slane %v1192, %v1448
    %v1450 = vsel %vm1260, %v1449, %v1445
    %v1451 = vlaneseq
    %v1452 = vshrl.u32 %v1451, 7
    %v1453 = vsub.s32 %v1250, %v1452
    %v1454 = vrot.slane %v1194, %v1453
    %v1455 = vlaneseq
    %v1456 = vshrl.u32 %v1455, 7
    %v1457 = vsub.s32 %v1255, %v1456
    %v1458 = vrot.slane %v1196, %v1457
    %v1459 = vsel %vm1260, %v1458, %v1454
    %v1460 = vlaneseq
    %v1461 = vshrl.u32 %v1460, 7
    %v1462 = vsub.s32 %v1250, %v1461
    %v1463 = vrot.slane %v1198, %v1462
    %v1464 = vlaneseq
    %v1465 = vshrl.u32 %v1464, 7
    %v1466 = vsub.s32 %v1255, %v1465
    %v1467 = vrot.slane %v1200, %v1466
    %v1468 = vsel %vm1260, %v1467, %v1463
    %vm1469 = vcmask 1041409
    %v1470 = vsel %vm1469, %v1270, %v1261
    %vm1471 = vcmask 1042434
    %v1472 = vsel %vm1471, %v1279, %v1470
    %vm1473 = vcmask 1043459
    %v1474 = vsel %vm1473, %v1288, %v1472
    %vm1475 = vcmask 1044484
    %v1476 = vsel %vm1475, %v1297, %v1474
    %vm1477 = vcmask 1045509
    %v1478 = vsel %vm1477, %v1306, %v1476
    %vm1479 = vcmask 1046534
    %v1480 = vsel %vm1479, %v1315, %v1478
    %vm1481 = vcmask 1047559
    %v1482 = vsel %vm1481, %v1324, %v1480
    %v1483 = vsel %vm1469, %v1342, %v1333
    %v1484 = vsel %vm1471, %v1351, %v1483
    %v1485 = vsel %vm1473, %v1360, %v1484
    %v1486 = vsel %vm1475, %v1369, %v1485
    %v1487 = vsel %vm1477, %v1378, %v1486
    %v1488 = vsel %vm1479, %v1387, %v1487
    %v1489 = vsel %vm1481, %v1396, %v1488
    %v1490 = vsel %vm1469, %v1414, %v1405
    %v1491 = vsel %vm1471, %v1423, %v1490
    %v1492 = vsel %vm1473, %v1432, %v1491
    %v1493 = vsel %vm1475, %v1441, %v1492
    %v1494 = vsel %vm1477, %v1450, %v1493
    %v1495 = vsel %vm1479, %v1459, %v1494
    %v1496 = vsel %vm1481, %v1468, %v1495
    %vm1500 = vcmask 130048
    %v1501 = vsel %vm1500, %v1482, -inf
    %1502 = vmax.xlane.f32.xlu0 %v1501
    %v1503 = vpop.xlane.xlu0 %1502
    %v1504 = vsel %vm1500, %v1489, -inf
    %1505 = vmax.xlane.f32.xlu0 %v1504
    %v1506 = vpop.xlane.xlu0 %1505
    %v1507 = vsel %vm1500, %v1496, -inf
    %1508 = vmax.xlane.f32.xlu0 %v1507
    %v1509 = vpop.xlane.xlu0 %1508
    %v1513 = vlaneseq
    %v1514 = vshrl.u32 %v1513, 7
    %v1515 = vsub.s32 0, %v1514
    %v1516 = vrot.slane %v1503, %v1515
    %v1517 = vlaneseq
    %v1518 = vshrl.u32 %v1517, 7
    %v1519 = vsub.s32 1, %v1518
    %v1520 = vrot.slane %v1503, %v1519
    %v1521 = vlaneseq
    %v1522 = vshrl.u32 %v1521, 7
    %v1523 = vsub.s32 2, %v1522
    %v1524 = vrot.slane %v1503, %v1523
    %v1525 = vlaneseq
    %v1526 = vshrl.u32 %v1525, 7
    %v1527 = vsub.s32 3, %v1526
    %v1528 = vrot.slane %v1503, %v1527
    %v1529 = vlaneseq
    %v1530 = vshrl.u32 %v1529, 7
    %v1531 = vsub.s32 4, %v1530
    %v1532 = vrot.slane %v1503, %v1531
    %v1533 = vlaneseq
    %v1534 = vshrl.u32 %v1533, 7
    %v1535 = vsub.s32 5, %v1534
    %v1536 = vrot.slane %v1503, %v1535
    %v1537 = vlaneseq
    %v1538 = vshrl.u32 %v1537, 7
    %v1539 = vsub.s32 6, %v1538
    %v1540 = vrot.slane %v1503, %v1539
    %v1541 = vlaneseq
    %v1542 = vshrl.u32 %v1541, 7
    %v1543 = vsub.s32 7, %v1542
    %v1544 = vrot.slane %v1503, %v1543
    %v1545 = vlaneseq
    %v1546 = vshrl.u32 %v1545, 7
    %v1547 = vsub.s32 0, %v1546
    %v1548 = vrot.slane %v1506, %v1547
    %v1549 = vlaneseq
    %v1550 = vshrl.u32 %v1549, 7
    %v1551 = vsub.s32 1, %v1550
    %v1552 = vrot.slane %v1506, %v1551
    %v1553 = vlaneseq
    %v1554 = vshrl.u32 %v1553, 7
    %v1555 = vsub.s32 2, %v1554
    %v1556 = vrot.slane %v1506, %v1555
    %v1557 = vlaneseq
    %v1558 = vshrl.u32 %v1557, 7
    %v1559 = vsub.s32 3, %v1558
    %v1560 = vrot.slane %v1506, %v1559
    %v1561 = vlaneseq
    %v1562 = vshrl.u32 %v1561, 7
    %v1563 = vsub.s32 4, %v1562
    %v1564 = vrot.slane %v1506, %v1563
    %v1565 = vlaneseq
    %v1566 = vshrl.u32 %v1565, 7
    %v1567 = vsub.s32 5, %v1566
    %v1568 = vrot.slane %v1506, %v1567
    %v1569 = vlaneseq
    %v1570 = vshrl.u32 %v1569, 7
    %v1571 = vsub.s32 6, %v1570
    %v1572 = vrot.slane %v1506, %v1571
    %v1573 = vlaneseq
    %v1574 = vshrl.u32 %v1573, 7
    %v1575 = vsub.s32 7, %v1574
    %v1576 = vrot.slane %v1506, %v1575
    %v1577 = vlaneseq
    %v1578 = vshrl.u32 %v1577, 7
    %v1579 = vsub.s32 0, %v1578
    %v1580 = vrot.slane %v1509, %v1579
    %v1581 = vlaneseq
    %v1582 = vshrl.u32 %v1581, 7
    %v1583 = vsub.s32 1, %v1582
    %v1584 = vrot.slane %v1509, %v1583
    %v1585 = vlaneseq
    %v1586 = vshrl.u32 %v1585, 7
    %v1587 = vsub.s32 2, %v1586
    %v1588 = vrot.slane %v1509, %v1587
    %v1589 = vlaneseq
    %v1590 = vshrl.u32 %v1589, 7
    %v1591 = vsub.s32 3, %v1590
    %v1592 = vrot.slane %v1509, %v1591
    %v1593 = vlaneseq
    %v1594 = vshrl.u32 %v1593, 7
    %v1595 = vsub.s32 4, %v1594
    %v1596 = vrot.slane %v1509, %v1595
    %v1597 = vlaneseq
    %v1598 = vshrl.u32 %v1597, 7
    %v1599 = vsub.s32 5, %v1598
    %v1600 = vrot.slane %v1509, %v1599
    %v1601 = vlaneseq
    %v1602 = vshrl.u32 %v1601, 7
    %v1603 = vsub.s32 6, %v1602
    %v1604 = vrot.slane %v1509, %v1603
    %v1605 = vlaneseq
    %v1606 = vshrl.u32 %v1605, 7
    %v1607 = vsub.s32 7, %v1606
    %v1608 = vrot.slane %v1509, %v1607
    %v1633 = vsub.f32 %v1106, %v1516
    %v1634 = vsub.f32 %v1108, %v1516
    %v1635 = vsub.f32 %v1110, %v1520
    %v1636 = vsub.f32 %v1112, %v1520
    %v1637 = vsub.f32 %v1114, %v1524
    %v1638 = vsub.f32 %v1116, %v1524
    %v1639 = vsub.f32 %v1118, %v1528
    %v1640 = vsub.f32 %v1120, %v1528
    %v1641 = vsub.f32 %v1122, %v1532
    %v1642 = vsub.f32 %v1124, %v1532
    %v1643 = vsub.f32 %v1126, %v1536
    %v1644 = vsub.f32 %v1128, %v1536
    %v1645 = vsub.f32 %v1130, %v1540
    %v1646 = vsub.f32 %v1132, %v1540
    %v1647 = vsub.f32 %v1134, %v1544
    %v1648 = vsub.f32 %v1136, %v1544
    %v1649 = vsub.f32 %v1138, %v1548
    %v1650 = vsub.f32 %v1140, %v1548
    %v1651 = vsub.f32 %v1142, %v1552
    %v1652 = vsub.f32 %v1144, %v1552
    %v1653 = vsub.f32 %v1146, %v1556
    %v1654 = vsub.f32 %v1148, %v1556
    %v1655 = vsub.f32 %v1150, %v1560
    %v1656 = vsub.f32 %v1152, %v1560
    %v1657 = vsub.f32 %v1154, %v1564
    %v1658 = vsub.f32 %v1156, %v1564
    %v1659 = vsub.f32 %v1158, %v1568
    %v1660 = vsub.f32 %v1160, %v1568
    %v1661 = vsub.f32 %v1162, %v1572
    %v1662 = vsub.f32 %v1164, %v1572
    %v1663 = vsub.f32 %v1166, %v1576
    %v1664 = vsub.f32 %v1168, %v1576
    %v1665 = vsub.f32 %v1170, %v1580
    %v1666 = vsub.f32 %v1172, %v1580
    %v1667 = vsub.f32 %v1174, %v1584
    %v1668 = vsub.f32 %v1176, %v1584
    %v1669 = vsub.f32 %v1178, %v1588
    %v1670 = vsub.f32 %v1180, %v1588
    %v1671 = vsub.f32 %v1182, %v1592
    %v1672 = vsub.f32 %v1184, %v1592
    %v1673 = vsub.f32 %v1186, %v1596
    %v1674 = vsub.f32 %v1188, %v1596
    %v1675 = vsub.f32 %v1190, %v1600
    %v1676 = vsub.f32 %v1192, %v1600
    %v1677 = vsub.f32 %v1194, %v1604
    %v1678 = vsub.f32 %v1196, %v1604
    %v1679 = vsub.f32 %v1198, %v1608
    %v1680 = vsub.f32 %v1200, %v1608
    %v1681 = vmul.f32 %v1633, 1.442695
    %v1682 = vpow.pop %v1681
    %v1683 = vmul.f32 %v1634, 1.442695
    %v1684 = vpow.pop %v1683
    %v1685 = vmul.f32 %v1635, 1.442695
    %v1686 = vpow.pop %v1685
    %v1687 = vmul.f32 %v1636, 1.442695
    %v1688 = vpow.pop %v1687
    %v1689 = vmul.f32 %v1637, 1.442695
    %v1690 = vpow.pop %v1689
    %v1691 = vmul.f32 %v1638, 1.442695
    %v1692 = vpow.pop %v1691
    %v1693 = vmul.f32 %v1639, 1.442695
    %v1694 = vpow.pop %v1693
    %v1695 = vmul.f32 %v1640, 1.442695
    %v1696 = vpow.pop %v1695
    %v1697 = vmul.f32 %v1641, 1.442695
    %v1698 = vpow.pop %v1697
    %v1699 = vmul.f32 %v1642, 1.442695
    %v1700 = vpow.pop %v1699
    %v1701 = vmul.f32 %v1643, 1.442695
    %v1702 = vpow.pop %v1701
    %v1703 = vmul.f32 %v1644, 1.442695
    %v1704 = vpow.pop %v1703
    %v1705 = vmul.f32 %v1645, 1.442695
    %v1706 = vpow.pop %v1705
    %v1707 = vmul.f32 %v1646, 1.442695
    %v1708 = vpow.pop %v1707
    %v1709 = vmul.f32 %v1647, 1.442695
    %v1710 = vpow.pop %v1709
    %v1711 = vmul.f32 %v1648, 1.442695
    %v1712 = vpow.pop %v1711
    %v1713 = vmul.f32 %v1649, 1.442695
    %v1714 = vpow.pop %v1713
    %v1715 = vmul.f32 %v1650, 1.442695
    %v1716 = vpow.pop %v1715
    %v1717 = vmul.f32 %v1651, 1.442695
    %v1718 = vpow.pop %v1717
    %v1719 = vmul.f32 %v1652, 1.442695
    %v1720 = vpow.pop %v1719
    %v1721 = vmul.f32 %v1653, 1.442695
    %v1722 = vpow.pop %v1721
    %v1723 = vmul.f32 %v1654, 1.442695
    %v1724 = vpow.pop %v1723
    %v1725 = vmul.f32 %v1655, 1.442695
    %v1726 = vpow.pop %v1725
    %v1727 = vmul.f32 %v1656, 1.442695
    %v1728 = vpow.pop %v1727
    %v1729 = vmul.f32 %v1657, 1.442695
    %v1730 = vpow.pop %v1729
    %v1731 = vmul.f32 %v1658, 1.442695
    %v1732 = vpow.pop %v1731
    %v1733 = vmul.f32 %v1659, 1.442695
    %v1734 = vpow.pop %v1733
    %v1735 = vmul.f32 %v1660, 1.442695
    %v1736 = vpow.pop %v1735
    %v1737 = vmul.f32 %v1661, 1.442695
    %v1738 = vpow.pop %v1737
    %v1739 = vmul.f32 %v1662, 1.442695
    %v1740 = vpow.pop %v1739
    %v1741 = vmul.f32 %v1663, 1.442695
    %v1742 = vpow.pop %v1741
    %v1743 = vmul.f32 %v1664, 1.442695
    %v1744 = vpow.pop %v1743
    %v1745 = vmul.f32 %v1665, 1.442695
    %v1746 = vpow.pop %v1745
    %v1747 = vmul.f32 %v1666, 1.442695
    %v1748 = vpow.pop %v1747
    %v1749 = vmul.f32 %v1667, 1.442695
    %v1750 = vpow.pop %v1749
    %v1751 = vmul.f32 %v1668, 1.442695
    %v1752 = vpow.pop %v1751
    %v1753 = vmul.f32 %v1669, 1.442695
    %v1754 = vpow.pop %v1753
    %v1755 = vmul.f32 %v1670, 1.442695
    %v1756 = vpow.pop %v1755
    %v1757 = vmul.f32 %v1671, 1.442695
    %v1758 = vpow.pop %v1757
    %v1759 = vmul.f32 %v1672, 1.442695
    %v1760 = vpow.pop %v1759
    %v1761 = vmul.f32 %v1673, 1.442695
    %v1762 = vpow.pop %v1761
    %v1763 = vmul.f32 %v1674, 1.442695
    %v1764 = vpow.pop %v1763
    %v1765 = vmul.f32 %v1675, 1.442695
    %v1766 = vpow.pop %v1765
    %v1767 = vmul.f32 %v1676, 1.442695
    %v1768 = vpow.pop %v1767
    %v1769 = vmul.f32 %v1677, 1.442695
    %v1770 = vpow.pop %v1769
    %v1771 = vmul.f32 %v1678, 1.442695
    %v1772 = vpow.pop %v1771
    %v1773 = vmul.f32 %v1679, 1.442695
    %v1774 = vpow.pop %v1773
    %v1775 = vmul.f32 %v1680, 1.442695
    %v1776 = vpow.pop %v1775
    %1825 = vset.pattern.permute.xlu0 0
    %1826 = vperm.xlu0 %1825, %v1682
    %v1827 = vpop.permute.xlu0 %1826
    %1828 = vset.pattern.permute.xlu0 0
    %1829 = vperm.xlu0 %1828, %v1684
    %v1830 = vpop.permute.xlu0 %1829
    %1831 = vset.pattern.permute.xlu0 0
    %1832 = vperm.xlu0 %1831, %v1686
    %v1833 = vpop.permute.xlu0 %1832
    %1834 = vset.pattern.permute.xlu0 0
    %1835 = vperm.xlu0 %1834, %v1688
    %v1836 = vpop.permute.xlu0 %1835
    %1837 = vset.pattern.permute.xlu0 0
    %1838 = vperm.xlu0 %1837, %v1690
    %v1839 = vpop.permute.xlu0 %1838
    %1840 = vset.pattern.permute.xlu0 0
    %1841 = vperm.xlu0 %1840, %v1692
    %v1842 = vpop.permute.xlu0 %1841
    %1843 = vset.pattern.permute.xlu0 0
    %1844 = vperm.xlu0 %1843, %v1694
    %v1845 = vpop.permute.xlu0 %1844
    %1846 = vset.pattern.permute.xlu0 0
    %1847 = vperm.xlu0 %1846, %v1696
    %v1848 = vpop.permute.xlu0 %1847
    %1849 = vset.pattern.permute.xlu0 0
    %1850 = vperm.xlu0 %1849, %v1698
    %v1851 = vpop.permute.xlu0 %1850
    %1852 = vset.pattern.permute.xlu0 0
    %1853 = vperm.xlu0 %1852, %v1700
    %v1854 = vpop.permute.xlu0 %1853
    %1855 = vset.pattern.permute.xlu0 0
    %1856 = vperm.xlu0 %1855, %v1702
    %v1857 = vpop.permute.xlu0 %1856
    %1858 = vset.pattern.permute.xlu0 0
    %1859 = vperm.xlu0 %1858, %v1704
    %v1860 = vpop.permute.xlu0 %1859
    %1861 = vset.pattern.permute.xlu0 0
    %1862 = vperm.xlu0 %1861, %v1706
    %v1863 = vpop.permute.xlu0 %1862
    %1864 = vset.pattern.permute.xlu0 0
    %1865 = vperm.xlu0 %1864, %v1708
    %v1866 = vpop.permute.xlu0 %1865
    %1867 = vset.pattern.permute.xlu0 0
    %1868 = vperm.xlu0 %1867, %v1710
    %v1869 = vpop.permute.xlu0 %1868
    %1870 = vset.pattern.permute.xlu0 0
    %1871 = vperm.xlu0 %1870, %v1712
    %v1872 = vpop.permute.xlu0 %1871
    %1873 = vset.pattern.permute.xlu0 0
    %1874 = vperm.xlu0 %1873, %v1714
    %v1875 = vpop.permute.xlu0 %1874
    %1876 = vset.pattern.permute.xlu0 0
    %1877 = vperm.xlu0 %1876, %v1716
    %v1878 = vpop.permute.xlu0 %1877
    %1879 = vset.pattern.permute.xlu0 0
    %1880 = vperm.xlu0 %1879, %v1718
    %v1881 = vpop.permute.xlu0 %1880
    %1882 = vset.pattern.permute.xlu0 0
    %1883 = vperm.xlu0 %1882, %v1720
    %v1884 = vpop.permute.xlu0 %1883
    %1885 = vset.pattern.permute.xlu0 0
    %1886 = vperm.xlu0 %1885, %v1722
    %v1887 = vpop.permute.xlu0 %1886
    %1888 = vset.pattern.permute.xlu0 0
    %1889 = vperm.xlu0 %1888, %v1724
    %v1890 = vpop.permute.xlu0 %1889
    %1891 = vset.pattern.permute.xlu0 0
    %1892 = vperm.xlu0 %1891, %v1726
    %v1893 = vpop.permute.xlu0 %1892
    %1894 = vset.pattern.permute.xlu0 0
    %1895 = vperm.xlu0 %1894, %v1728
    %v1896 = vpop.permute.xlu0 %1895
    %1897 = vset.pattern.permute.xlu0 0
    %1898 = vperm.xlu0 %1897, %v1730
    %v1899 = vpop.permute.xlu0 %1898
    %1900 = vset.pattern.permute.xlu0 0
    %1901 = vperm.xlu0 %1900, %v1732
    %v1902 = vpop.permute.xlu0 %1901
    %1903 = vset.pattern.permute.xlu0 0
    %1904 = vperm.xlu0 %1903, %v1734
    %v1905 = vpop.permute.xlu0 %1904
    %1906 = vset.pattern.permute.xlu0 0
    %1907 = vperm.xlu0 %1906, %v1736
    %v1908 = vpop.permute.xlu0 %1907
    %1909 = vset.pattern.permute.xlu0 0
    %1910 = vperm.xlu0 %1909, %v1738
    %v1911 = vpop.permute.xlu0 %1910
    %1912 = vset.pattern.permute.xlu0 0
    %1913 = vperm.xlu0 %1912, %v1740
    %v1914 = vpop.permute.xlu0 %1913
    %1915 = vset.pattern.permute.xlu0 0
    %1916 = vperm.xlu0 %1915, %v1742
    %v1917 = vpop.permute.xlu0 %1916
    %1918 = vset.pattern.permute.xlu0 0
    %1919 = vperm.xlu0 %1918, %v1744
    %v1920 = vpop.permute.xlu0 %1919
    %1921 = vset.pattern.permute.xlu0 0
    %1922 = vperm.xlu0 %1921, %v1746
    %v1923 = vpop.permute.xlu0 %1922
    %1924 = vset.pattern.permute.xlu0 0
    %1925 = vperm.xlu0 %1924, %v1748
    %v1926 = vpop.permute.xlu0 %1925
    %1927 = vset.pattern.permute.xlu0 0
    %1928 = vperm.xlu0 %1927, %v1750
    %v1929 = vpop.permute.xlu0 %1928
    %1930 = vset.pattern.permute.xlu0 0
    %1931 = vperm.xlu0 %1930, %v1752
    %v1932 = vpop.permute.xlu0 %1931
    %1933 = vset.pattern.permute.xlu0 0
    %1934 = vperm.xlu0 %1933, %v1754
    %v1935 = vpop.permute.xlu0 %1934
    %1936 = vset.pattern.permute.xlu0 0
    %1937 = vperm.xlu0 %1936, %v1756
    %v1938 = vpop.permute.xlu0 %1937
    %1939 = vset.pattern.permute.xlu0 0
    %1940 = vperm.xlu0 %1939, %v1758
    %v1941 = vpop.permute.xlu0 %1940
    %1942 = vset.pattern.permute.xlu0 0
    %1943 = vperm.xlu0 %1942, %v1760
    %v1944 = vpop.permute.xlu0 %1943
    %1945 = vset.pattern.permute.xlu0 0
    %1946 = vperm.xlu0 %1945, %v1762
    %v1947 = vpop.permute.xlu0 %1946
    %1948 = vset.pattern.permute.xlu0 0
    %1949 = vperm.xlu0 %1948, %v1764
    %v1950 = vpop.permute.xlu0 %1949
    %1951 = vset.pattern.permute.xlu0 0
    %1952 = vperm.xlu0 %1951, %v1766
    %v1953 = vpop.permute.xlu0 %1952
    %1954 = vset.pattern.permute.xlu0 0
    %1955 = vperm.xlu0 %1954, %v1768
    %v1956 = vpop.permute.xlu0 %1955
    %1957 = vset.pattern.permute.xlu0 0
    %1958 = vperm.xlu0 %1957, %v1770
    %v1959 = vpop.permute.xlu0 %1958
    %1960 = vset.pattern.permute.xlu0 0
    %1961 = vperm.xlu0 %1960, %v1772
    %v1962 = vpop.permute.xlu0 %1961
    %1963 = vset.pattern.permute.xlu0 0
    %1964 = vperm.xlu0 %1963, %v1774
    %v1965 = vpop.permute.xlu0 %1964
    %1966 = vset.pattern.permute.xlu0 0
    %1967 = vperm.xlu0 %1966, %v1776
    %v1968 = vpop.permute.xlu0 %1967
    %v1969 = vlaneseq
    %v1970 = vshrl.u32 %v1969, 7
    %v1971 = vsub.s32 %v1250, %v1970
    %v1972 = vrot.slane %v1827, %v1971
    %v1973 = vlaneseq
    %v1974 = vshrl.u32 %v1973, 7
    %v1975 = vsub.s32 %v1255, %v1974
    %v1976 = vrot.slane %v1830, %v1975
    %v1977 = vsel %vm1260, %v1976, %v1972
    %v1978 = vlaneseq
    %v1979 = vshrl.u32 %v1978, 7
    %v1980 = vsub.s32 %v1250, %v1979
    %v1981 = vrot.slane %v1833, %v1980
    %v1982 = vlaneseq
    %v1983 = vshrl.u32 %v1982, 7
    %v1984 = vsub.s32 %v1255, %v1983
    %v1985 = vrot.slane %v1836, %v1984
    %v1986 = vsel %vm1260, %v1985, %v1981
    %v1987 = vlaneseq
    %v1988 = vshrl.u32 %v1987, 7
    %v1989 = vsub.s32 %v1250, %v1988
    %v1990 = vrot.slane %v1839, %v1989
    %v1991 = vlaneseq
    %v1992 = vshrl.u32 %v1991, 7
    %v1993 = vsub.s32 %v1255, %v1992
    %v1994 = vrot.slane %v1842, %v1993
    %v1995 = vsel %vm1260, %v1994, %v1990
    %v1996 = vlaneseq
    %v1997 = vshrl.u32 %v1996, 7
    %v1998 = vsub.s32 %v1250, %v1997
    %v1999 = vrot.slane %v1845, %v1998
    %v2000 = vlaneseq
    %v2001 = vshrl.u32 %v2000, 7
    %v2002 = vsub.s32 %v1255, %v2001
    %v2003 = vrot.slane %v1848, %v2002
    %v2004 = vsel %vm1260, %v2003, %v1999
    %v2005 = vlaneseq
    %v2006 = vshrl.u32 %v2005, 7
    %v2007 = vsub.s32 %v1250, %v2006
    %v2008 = vrot.slane %v1851, %v2007
    %v2009 = vlaneseq
    %v2010 = vshrl.u32 %v2009, 7
    %v2011 = vsub.s32 %v1255, %v2010
    %v2012 = vrot.slane %v1854, %v2011
    %v2013 = vsel %vm1260, %v2012, %v2008
    %v2014 = vlaneseq
    %v2015 = vshrl.u32 %v2014, 7
    %v2016 = vsub.s32 %v1250, %v2015
    %v2017 = vrot.slane %v1857, %v2016
    %v2018 = vlaneseq
    %v2019 = vshrl.u32 %v2018, 7
    %v2020 = vsub.s32 %v1255, %v2019
    %v2021 = vrot.slane %v1860, %v2020
    %v2022 = vsel %vm1260, %v2021, %v2017
    %v2023 = vlaneseq
    %v2024 = vshrl.u32 %v2023, 7
    %v2025 = vsub.s32 %v1250, %v2024
    %v2026 = vrot.slane %v1863, %v2025
    %v2027 = vlaneseq
    %v2028 = vshrl.u32 %v2027, 7
    %v2029 = vsub.s32 %v1255, %v2028
    %v2030 = vrot.slane %v1866, %v2029
    %v2031 = vsel %vm1260, %v2030, %v2026
    %v2032 = vlaneseq
    %v2033 = vshrl.u32 %v2032, 7
    %v2034 = vsub.s32 %v1250, %v2033
    %v2035 = vrot.slane %v1869, %v2034
    %v2036 = vlaneseq
    %v2037 = vshrl.u32 %v2036, 7
    %v2038 = vsub.s32 %v1255, %v2037
    %v2039 = vrot.slane %v1872, %v2038
    %v2040 = vsel %vm1260, %v2039, %v2035
    %v2041 = vlaneseq
    %v2042 = vshrl.u32 %v2041, 7
    %v2043 = vsub.s32 %v1250, %v2042
    %v2044 = vrot.slane %v1875, %v2043
    %v2045 = vlaneseq
    %v2046 = vshrl.u32 %v2045, 7
    %v2047 = vsub.s32 %v1255, %v2046
    %v2048 = vrot.slane %v1878, %v2047
    %v2049 = vsel %vm1260, %v2048, %v2044
    %v2050 = vlaneseq
    %v2051 = vshrl.u32 %v2050, 7
    %v2052 = vsub.s32 %v1250, %v2051
    %v2053 = vrot.slane %v1881, %v2052
    %v2054 = vlaneseq
    %v2055 = vshrl.u32 %v2054, 7
    %v2056 = vsub.s32 %v1255, %v2055
    %v2057 = vrot.slane %v1884, %v2056
    %v2058 = vsel %vm1260, %v2057, %v2053
    %v2059 = vlaneseq
    %v2060 = vshrl.u32 %v2059, 7
    %v2061 = vsub.s32 %v1250, %v2060
    %v2062 = vrot.slane %v1887, %v2061
    %v2063 = vlaneseq
    %v2064 = vshrl.u32 %v2063, 7
    %v2065 = vsub.s32 %v1255, %v2064
    %v2066 = vrot.slane %v1890, %v2065
    %v2067 = vsel %vm1260, %v2066, %v2062
    %v2068 = vlaneseq
    %v2069 = vshrl.u32 %v2068, 7
    %v2070 = vsub.s32 %v1250, %v2069
    %v2071 = vrot.slane %v1893, %v2070
    %v2072 = vlaneseq
    %v2073 = vshrl.u32 %v2072, 7
    %v2074 = vsub.s32 %v1255, %v2073
    %v2075 = vrot.slane %v1896, %v2074
    %v2076 = vsel %vm1260, %v2075, %v2071
    %v2077 = vlaneseq
    %v2078 = vshrl.u32 %v2077, 7
    %v2079 = vsub.s32 %v1250, %v2078
    %v2080 = vrot.slane %v1899, %v2079
    %v2081 = vlaneseq
    %v2082 = vshrl.u32 %v2081, 7
    %v2083 = vsub.s32 %v1255, %v2082
    %v2084 = vrot.slane %v1902, %v2083
    %v2085 = vsel %vm1260, %v2084, %v2080
    %v2086 = vlaneseq
    %v2087 = vshrl.u32 %v2086, 7
    %v2088 = vsub.s32 %v1250, %v2087
    %v2089 = vrot.slane %v1905, %v2088
    %v2090 = vlaneseq
    %v2091 = vshrl.u32 %v2090, 7
    %v2092 = vsub.s32 %v1255, %v2091
    %v2093 = vrot.slane %v1908, %v2092
    %v2094 = vsel %vm1260, %v2093, %v2089
    %v2095 = vlaneseq
    %v2096 = vshrl.u32 %v2095, 7
    %v2097 = vsub.s32 %v1250, %v2096
    %v2098 = vrot.slane %v1911, %v2097
    %v2099 = vlaneseq
    %v2100 = vshrl.u32 %v2099, 7
    %v2101 = vsub.s32 %v1255, %v2100
    %v2102 = vrot.slane %v1914, %v2101
    %v2103 = vsel %vm1260, %v2102, %v2098
    %v2104 = vlaneseq
    %v2105 = vshrl.u32 %v2104, 7
    %v2106 = vsub.s32 %v1250, %v2105
    %v2107 = vrot.slane %v1917, %v2106
    %v2108 = vlaneseq
    %v2109 = vshrl.u32 %v2108, 7
    %v2110 = vsub.s32 %v1255, %v2109
    %v2111 = vrot.slane %v1920, %v2110
    %v2112 = vsel %vm1260, %v2111, %v2107
    %v2113 = vlaneseq
    %v2114 = vshrl.u32 %v2113, 7
    %v2115 = vsub.s32 %v1250, %v2114
    %v2116 = vrot.slane %v1923, %v2115
    %v2117 = vlaneseq
    %v2118 = vshrl.u32 %v2117, 7
    %v2119 = vsub.s32 %v1255, %v2118
    %v2120 = vrot.slane %v1926, %v2119
    %v2121 = vsel %vm1260, %v2120, %v2116
    %v2122 = vlaneseq
    %v2123 = vshrl.u32 %v2122, 7
    %v2124 = vsub.s32 %v1250, %v2123
    %v2125 = vrot.slane %v1929, %v2124
    %v2126 = vlaneseq
    %v2127 = vshrl.u32 %v2126, 7
    %v2128 = vsub.s32 %v1255, %v2127
    %v2129 = vrot.slane %v1932, %v2128
    %v2130 = vsel %vm1260, %v2129, %v2125
    %v2131 = vlaneseq
    %v2132 = vshrl.u32 %v2131, 7
    %v2133 = vsub.s32 %v1250, %v2132
    %v2134 = vrot.slane %v1935, %v2133
    %v2135 = vlaneseq
    %v2136 = vshrl.u32 %v2135, 7
    %v2137 = vsub.s32 %v1255, %v2136
    %v2138 = vrot.slane %v1938, %v2137
    %v2139 = vsel %vm1260, %v2138, %v2134
    %v2140 = vlaneseq
    %v2141 = vshrl.u32 %v2140, 7
    %v2142 = vsub.s32 %v1250, %v2141
    %v2143 = vrot.slane %v1941, %v2142
    %v2144 = vlaneseq
    %v2145 = vshrl.u32 %v2144, 7
    %v2146 = vsub.s32 %v1255, %v2145
    %v2147 = vrot.slane %v1944, %v2146
    %v2148 = vsel %vm1260, %v2147, %v2143
    %v2149 = vlaneseq
    %v2150 = vshrl.u32 %v2149, 7
    %v2151 = vsub.s32 %v1250, %v2150
    %v2152 = vrot.slane %v1947, %v2151
    %v2153 = vlaneseq
    %v2154 = vshrl.u32 %v2153, 7
    %v2155 = vsub.s32 %v1255, %v2154
    %v2156 = vrot.slane %v1950, %v2155
    %v2157 = vsel %vm1260, %v2156, %v2152
    %v2158 = vlaneseq
    %v2159 = vshrl.u32 %v2158, 7
    %v2160 = vsub.s32 %v1250, %v2159
    %v2161 = vrot.slane %v1953, %v2160
    %v2162 = vlaneseq
    %v2163 = vshrl.u32 %v2162, 7
    %v2164 = vsub.s32 %v1255, %v2163
    %v2165 = vrot.slane %v1956, %v2164
    %v2166 = vsel %vm1260, %v2165, %v2161
    %v2167 = vlaneseq
    %v2168 = vshrl.u32 %v2167, 7
    %v2169 = vsub.s32 %v1250, %v2168
    %v2170 = vrot.slane %v1959, %v2169
    %v2171 = vlaneseq
    %v2172 = vshrl.u32 %v2171, 7
    %v2173 = vsub.s32 %v1255, %v2172
    %v2174 = vrot.slane %v1962, %v2173
    %v2175 = vsel %vm1260, %v2174, %v2170
    %v2176 = vlaneseq
    %v2177 = vshrl.u32 %v2176, 7
    %v2178 = vsub.s32 %v1250, %v2177
    %v2179 = vrot.slane %v1965, %v2178
    %v2180 = vlaneseq
    %v2181 = vshrl.u32 %v2180, 7
    %v2182 = vsub.s32 %v1255, %v2181
    %v2183 = vrot.slane %v1968, %v2182
    %v2184 = vsel %vm1260, %v2183, %v2179
    %v2185 = vsel %vm1469, %v1986, %v1977
    %v2186 = vsel %vm1471, %v1995, %v2185
    %v2187 = vsel %vm1473, %v2004, %v2186
    %v2188 = vsel %vm1475, %v2013, %v2187
    %v2189 = vsel %vm1477, %v2022, %v2188
    %v2190 = vsel %vm1479, %v2031, %v2189
    %v2191 = vsel %vm1481, %v2040, %v2190
    %v2192 = vsel %vm1469, %v2058, %v2049
    %v2193 = vsel %vm1471, %v2067, %v2192
    %v2194 = vsel %vm1473, %v2076, %v2193
    %v2195 = vsel %vm1475, %v2085, %v2194
    %v2196 = vsel %vm1477, %v2094, %v2195
    %v2197 = vsel %vm1479, %v2103, %v2196
    %v2198 = vsel %vm1481, %v2112, %v2197
    %v2199 = vsel %vm1469, %v2130, %v2121
    %v2200 = vsel %vm1471, %v2139, %v2199
    %v2201 = vsel %vm1473, %v2148, %v2200
    %v2202 = vsel %vm1475, %v2157, %v2201
    %v2203 = vsel %vm1477, %v2166, %v2202
    %v2204 = vsel %vm1479, %v2175, %v2203
    %v2205 = vsel %vm1481, %v2184, %v2204
    %v2209 = vsel %vm1500, %v2191, 0.0
    %2210 = vadd.xlane.f32.xlu0 %v2209
    %v2211 = vpop.xlane.xlu0 %2210
    %v2212 = vsel %vm1500, %v2198, 0.0
    %2213 = vadd.xlane.f32.xlu0 %v2212
    %v2214 = vpop.xlane.xlu0 %2213
    %v2215 = vsel %vm1500, %v2205, 0.0
    %2216 = vadd.xlane.f32.xlu0 %v2215
    %v2217 = vpop.xlane.xlu0 %2216
    %v2218 = vrcp.pop %v2211
    %v2219 = vrcp.pop %v2214
    %v2220 = vrcp.pop %v2217
    %v2221 = vmul.f32 %v2211, %v2218
    %v2222 = vmul.f32 %v2214, %v2219
    %v2223 = vmul.f32 %v2217, %v2220
    %v2224 = vsub.f32 2.0, %v2221
    %v2225 = vsub.f32 2.0, %v2222
    %v2226 = vsub.f32 2.0, %v2223
    %v2227 = vmul.f32 %v2218, %v2224
    %v2228 = vmul.f32 %v2219, %v2225
    %v2229 = vmul.f32 %v2220, %v2226
    %v2233 = vlaneseq
    %v2234 = vshrl.u32 %v2233, 7
    %v2235 = vsub.s32 0, %v2234
    %v2236 = vrot.slane %v2227, %v2235
    %v2237 = vlaneseq
    %v2238 = vshrl.u32 %v2237, 7
    %v2239 = vsub.s32 1, %v2238
    %v2240 = vrot.slane %v2227, %v2239
    %v2241 = vlaneseq
    %v2242 = vshrl.u32 %v2241, 7
    %v2243 = vsub.s32 2, %v2242
    %v2244 = vrot.slane %v2227, %v2243
    %v2245 = vlaneseq
    %v2246 = vshrl.u32 %v2245, 7
    %v2247 = vsub.s32 3, %v2246
    %v2248 = vrot.slane %v2227, %v2247
    %v2249 = vlaneseq
    %v2250 = vshrl.u32 %v2249, 7
    %v2251 = vsub.s32 4, %v2250
    %v2252 = vrot.slane %v2227, %v2251
    %v2253 = vlaneseq
    %v2254 = vshrl.u32 %v2253, 7
    %v2255 = vsub.s32 5, %v2254
    %v2256 = vrot.slane %v2227, %v2255
    %v2257 = vlaneseq
    %v2258 = vshrl.u32 %v2257, 7
    %v2259 = vsub.s32 6, %v2258
    %v2260 = vrot.slane %v2227, %v2259
    %v2261 = vlaneseq
    %v2262 = vshrl.u32 %v2261, 7
    %v2263 = vsub.s32 7, %v2262
    %v2264 = vrot.slane %v2227, %v2263
    %v2265 = vlaneseq
    %v2266 = vshrl.u32 %v2265, 7
    %v2267 = vsub.s32 0, %v2266
    %v2268 = vrot.slane %v2228, %v2267
    %v2269 = vlaneseq
    %v2270 = vshrl.u32 %v2269, 7
    %v2271 = vsub.s32 1, %v2270
    %v2272 = vrot.slane %v2228, %v2271
    %v2273 = vlaneseq
    %v2274 = vshrl.u32 %v2273, 7
    %v2275 = vsub.s32 2, %v2274
    %v2276 = vrot.slane %v2228, %v2275
    %v2277 = vlaneseq
    %v2278 = vshrl.u32 %v2277, 7
    %v2279 = vsub.s32 3, %v2278
    %v2280 = vrot.slane %v2228, %v2279
    %v2281 = vlaneseq
    %v2282 = vshrl.u32 %v2281, 7
    %v2283 = vsub.s32 4, %v2282
    %v2284 = vrot.slane %v2228, %v2283
    %v2285 = vlaneseq
    %v2286 = vshrl.u32 %v2285, 7
    %v2287 = vsub.s32 5, %v2286
    %v2288 = vrot.slane %v2228, %v2287
    %v2289 = vlaneseq
    %v2290 = vshrl.u32 %v2289, 7
    %v2291 = vsub.s32 6, %v2290
    %v2292 = vrot.slane %v2228, %v2291
    %v2293 = vlaneseq
    %v2294 = vshrl.u32 %v2293, 7
    %v2295 = vsub.s32 7, %v2294
    %v2296 = vrot.slane %v2228, %v2295
    %v2297 = vlaneseq
    %v2298 = vshrl.u32 %v2297, 7
    %v2299 = vsub.s32 0, %v2298
    %v2300 = vrot.slane %v2229, %v2299
    %v2301 = vlaneseq
    %v2302 = vshrl.u32 %v2301, 7
    %v2303 = vsub.s32 1, %v2302
    %v2304 = vrot.slane %v2229, %v2303
    %v2305 = vlaneseq
    %v2306 = vshrl.u32 %v2305, 7
    %v2307 = vsub.s32 2, %v2306
    %v2308 = vrot.slane %v2229, %v2307
    %v2309 = vlaneseq
    %v2310 = vshrl.u32 %v2309, 7
    %v2311 = vsub.s32 3, %v2310
    %v2312 = vrot.slane %v2229, %v2311
    %v2313 = vlaneseq
    %v2314 = vshrl.u32 %v2313, 7
    %v2315 = vsub.s32 4, %v2314
    %v2316 = vrot.slane %v2229, %v2315
    %v2317 = vlaneseq
    %v2318 = vshrl.u32 %v2317, 7
    %v2319 = vsub.s32 5, %v2318
    %v2320 = vrot.slane %v2229, %v2319
    %v2321 = vlaneseq
    %v2322 = vshrl.u32 %v2321, 7
    %v2323 = vsub.s32 6, %v2322
    %v2324 = vrot.slane %v2229, %v2323
    %v2325 = vlaneseq
    %v2326 = vshrl.u32 %v2325, 7
    %v2327 = vsub.s32 7, %v2326
    %v2328 = vrot.slane %v2229, %v2327
    %v2353 = vmul.f32 %v1682, %v2236
    %v2354 = vmul.f32 %v1684, %v2236
    %v2355 = vmul.f32 %v1686, %v2240
    %v2356 = vmul.f32 %v1688, %v2240
    %v2357 = vmul.f32 %v1690, %v2244
    %v2358 = vmul.f32 %v1692, %v2244
    %v2359 = vmul.f32 %v1694, %v2248
    %v2360 = vmul.f32 %v1696, %v2248
    %v2361 = vmul.f32 %v1698, %v2252
    %v2362 = vmul.f32 %v1700, %v2252
    %v2363 = vmul.f32 %v1702, %v2256
    %v2364 = vmul.f32 %v1704, %v2256
    %v2365 = vmul.f32 %v1706, %v2260
    %v2366 = vmul.f32 %v1708, %v2260
    %v2367 = vmul.f32 %v1710, %v2264
    %v2368 = vmul.f32 %v1712, %v2264
    %v2369 = vmul.f32 %v1714, %v2268
    %v2370 = vmul.f32 %v1716, %v2268
    %v2371 = vmul.f32 %v1718, %v2272
    %v2372 = vmul.f32 %v1720, %v2272
    %v2373 = vmul.f32 %v1722, %v2276
    %v2374 = vmul.f32 %v1724, %v2276
    %v2375 = vmul.f32 %v1726, %v2280
    %v2376 = vmul.f32 %v1728, %v2280
    %v2377 = vmul.f32 %v1730, %v2284
    %v2378 = vmul.f32 %v1732, %v2284
    %v2379 = vmul.f32 %v1734, %v2288
    %v2380 = vmul.f32 %v1736, %v2288
    %v2381 = vmul.f32 %v1738, %v2292
    %v2382 = vmul.f32 %v1740, %v2292
    %v2383 = vmul.f32 %v1742, %v2296
    %v2384 = vmul.f32 %v1744, %v2296
    %v2385 = vmul.f32 %v1746, %v2300
    %v2386 = vmul.f32 %v1748, %v2300
    %v2387 = vmul.f32 %v1750, %v2304
    %v2388 = vmul.f32 %v1752, %v2304
    %v2389 = vmul.f32 %v1754, %v2308
    %v2390 = vmul.f32 %v1756, %v2308
    %v2391 = vmul.f32 %v1758, %v2312
    %v2392 = vmul.f32 %v1760, %v2312
    %v2393 = vmul.f32 %v1762, %v2316
    %v2394 = vmul.f32 %v1764, %v2316
    %v2395 = vmul.f32 %v1766, %v2320
    %v2396 = vmul.f32 %v1768, %v2320
    %v2397 = vmul.f32 %v1770, %v2324
    %v2398 = vmul.f32 %v1772, %v2324
    %v2399 = vmul.f32 %v1774, %v2328
    %v2400 = vmul.f32 %v1776, %v2328
    %2449 = vset.pattern.permute.xlu0 0
    %2450 = vperm.xlu0 %2449, %v2353
    %v2451 = vpop.permute.xlu0 %2450
    %2452 = vset.pattern.permute.xlu0 0
    %2453 = vperm.xlu0 %2452, %v2354
    %v2454 = vpop.permute.xlu0 %2453
    %2455 = vset.pattern.permute.xlu0 0
    %2456 = vperm.xlu0 %2455, %v2355
    %v2457 = vpop.permute.xlu0 %2456
    %2458 = vset.pattern.permute.xlu0 0
    %2459 = vperm.xlu0 %2458, %v2356
    %v2460 = vpop.permute.xlu0 %2459
    %2461 = vset.pattern.permute.xlu0 0
    %2462 = vperm.xlu0 %2461, %v2357
    %v2463 = vpop.permute.xlu0 %2462
    %2464 = vset.pattern.permute.xlu0 0
    %2465 = vperm.xlu0 %2464, %v2358
    %v2466 = vpop.permute.xlu0 %2465
    %2467 = vset.pattern.permute.xlu0 0
    %2468 = vperm.xlu0 %2467, %v2359
    %v2469 = vpop.permute.xlu0 %2468
    %2470 = vset.pattern.permute.xlu0 0
    %2471 = vperm.xlu0 %2470, %v2360
    %v2472 = vpop.permute.xlu0 %2471
    %2473 = vset.pattern.permute.xlu0 0
    %2474 = vperm.xlu0 %2473, %v2361
    %v2475 = vpop.permute.xlu0 %2474
    %2476 = vset.pattern.permute.xlu0 0
    %2477 = vperm.xlu0 %2476, %v2362
    %v2478 = vpop.permute.xlu0 %2477
    %2479 = vset.pattern.permute.xlu0 0
    %2480 = vperm.xlu0 %2479, %v2363
    %v2481 = vpop.permute.xlu0 %2480
    %2482 = vset.pattern.permute.xlu0 0
    %2483 = vperm.xlu0 %2482, %v2364
    %v2484 = vpop.permute.xlu0 %2483
    %2485 = vset.pattern.permute.xlu0 0
    %2486 = vperm.xlu0 %2485, %v2365
    %v2487 = vpop.permute.xlu0 %2486
    %2488 = vset.pattern.permute.xlu0 0
    %2489 = vperm.xlu0 %2488, %v2366
    %v2490 = vpop.permute.xlu0 %2489
    %2491 = vset.pattern.permute.xlu0 0
    %2492 = vperm.xlu0 %2491, %v2367
    %v2493 = vpop.permute.xlu0 %2492
    %2494 = vset.pattern.permute.xlu0 0
    %2495 = vperm.xlu0 %2494, %v2368
    %v2496 = vpop.permute.xlu0 %2495
    %2497 = vset.pattern.permute.xlu0 0
    %2498 = vperm.xlu0 %2497, %v2369
    %v2499 = vpop.permute.xlu0 %2498
    %2500 = vset.pattern.permute.xlu0 0
    %2501 = vperm.xlu0 %2500, %v2370
    %v2502 = vpop.permute.xlu0 %2501
    %2503 = vset.pattern.permute.xlu0 0
    %2504 = vperm.xlu0 %2503, %v2371
    %v2505 = vpop.permute.xlu0 %2504
    %2506 = vset.pattern.permute.xlu0 0
    %2507 = vperm.xlu0 %2506, %v2372
    %v2508 = vpop.permute.xlu0 %2507
    %2509 = vset.pattern.permute.xlu0 0
    %2510 = vperm.xlu0 %2509, %v2373
    %v2511 = vpop.permute.xlu0 %2510
    %2512 = vset.pattern.permute.xlu0 0
    %2513 = vperm.xlu0 %2512, %v2374
    %v2514 = vpop.permute.xlu0 %2513
    %2515 = vset.pattern.permute.xlu0 0
    %2516 = vperm.xlu0 %2515, %v2375
    %v2517 = vpop.permute.xlu0 %2516
    %2518 = vset.pattern.permute.xlu0 0
    %2519 = vperm.xlu0 %2518, %v2376
    %v2520 = vpop.permute.xlu0 %2519
    %2521 = vset.pattern.permute.xlu0 0
    %2522 = vperm.xlu0 %2521, %v2377
    %v2523 = vpop.permute.xlu0 %2522
    %2524 = vset.pattern.permute.xlu0 0
    %2525 = vperm.xlu0 %2524, %v2378
    %v2526 = vpop.permute.xlu0 %2525
    %2527 = vset.pattern.permute.xlu0 0
    %2528 = vperm.xlu0 %2527, %v2379
    %v2529 = vpop.permute.xlu0 %2528
    %2530 = vset.pattern.permute.xlu0 0
    %2531 = vperm.xlu0 %2530, %v2380
    %v2532 = vpop.permute.xlu0 %2531
    %2533 = vset.pattern.permute.xlu0 0
    %2534 = vperm.xlu0 %2533, %v2381
    %v2535 = vpop.permute.xlu0 %2534
    %2536 = vset.pattern.permute.xlu0 0
    %2537 = vperm.xlu0 %2536, %v2382
    %v2538 = vpop.permute.xlu0 %2537
    %2539 = vset.pattern.permute.xlu0 0
    %2540 = vperm.xlu0 %2539, %v2383
    %v2541 = vpop.permute.xlu0 %2540
    %2542 = vset.pattern.permute.xlu0 0
    %2543 = vperm.xlu0 %2542, %v2384
    %v2544 = vpop.permute.xlu0 %2543
    %2545 = vset.pattern.permute.xlu0 0
    %2546 = vperm.xlu0 %2545, %v2385
    %v2547 = vpop.permute.xlu0 %2546
    %2548 = vset.pattern.permute.xlu0 0
    %2549 = vperm.xlu0 %2548, %v2386
    %v2550 = vpop.permute.xlu0 %2549
    %2551 = vset.pattern.permute.xlu0 0
    %2552 = vperm.xlu0 %2551, %v2387
    %v2553 = vpop.permute.xlu0 %2552
    %2554 = vset.pattern.permute.xlu0 0
    %2555 = vperm.xlu0 %2554, %v2388
    %v2556 = vpop.permute.xlu0 %2555
    %2557 = vset.pattern.permute.xlu0 0
    %2558 = vperm.xlu0 %2557, %v2389
    %v2559 = vpop.permute.xlu0 %2558
    %2560 = vset.pattern.permute.xlu0 0
    %2561 = vperm.xlu0 %2560, %v2390
    %v2562 = vpop.permute.xlu0 %2561
    %2563 = vset.pattern.permute.xlu0 0
    %2564 = vperm.xlu0 %2563, %v2391
    %v2565 = vpop.permute.xlu0 %2564
    %2566 = vset.pattern.permute.xlu0 0
    %2567 = vperm.xlu0 %2566, %v2392
    %v2568 = vpop.permute.xlu0 %2567
    %2569 = vset.pattern.permute.xlu0 0
    %2570 = vperm.xlu0 %2569, %v2393
    %v2571 = vpop.permute.xlu0 %2570
    %2572 = vset.pattern.permute.xlu0 0
    %2573 = vperm.xlu0 %2572, %v2394
    %v2574 = vpop.permute.xlu0 %2573
    %2575 = vset.pattern.permute.xlu0 0
    %2576 = vperm.xlu0 %2575, %v2395
    %v2577 = vpop.permute.xlu0 %2576
    %2578 = vset.pattern.permute.xlu0 0
    %2579 = vperm.xlu0 %2578, %v2396
    %v2580 = vpop.permute.xlu0 %2579
    %2581 = vset.pattern.permute.xlu0 0
    %2582 = vperm.xlu0 %2581, %v2397
    %v2583 = vpop.permute.xlu0 %2582
    %2584 = vset.pattern.permute.xlu0 0
    %2585 = vperm.xlu0 %2584, %v2398
    %v2586 = vpop.permute.xlu0 %2585
    %2587 = vset.pattern.permute.xlu0 0
    %2588 = vperm.xlu0 %2587, %v2399
    %v2589 = vpop.permute.xlu0 %2588
    %2590 = vset.pattern.permute.xlu0 0
    %2591 = vperm.xlu0 %2590, %v2400
    %v2592 = vpop.permute.xlu0 %2591
    %v2593 = vlaneseq
    %v2594 = vshrl.u32 %v2593, 7
    %v2595 = vsub.s32 %v1250, %v2594
    %v2596 = vrot.slane %v2451, %v2595
    %v2597 = vlaneseq
    %v2598 = vshrl.u32 %v2597, 7
    %v2599 = vsub.s32 %v1255, %v2598
    %v2600 = vrot.slane %v2454, %v2599
    %v2601 = vsel %vm1260, %v2600, %v2596
    %v2602 = vlaneseq
    %v2603 = vshrl.u32 %v2602, 7
    %v2604 = vsub.s32 %v1250, %v2603
    %v2605 = vrot.slane %v2457, %v2604
    %v2606 = vlaneseq
    %v2607 = vshrl.u32 %v2606, 7
    %v2608 = vsub.s32 %v1255, %v2607
    %v2609 = vrot.slane %v2460, %v2608
    %v2610 = vsel %vm1260, %v2609, %v2605
    %v2611 = vlaneseq
    %v2612 = vshrl.u32 %v2611, 7
    %v2613 = vsub.s32 %v1250, %v2612
    %v2614 = vrot.slane %v2463, %v2613
    %v2615 = vlaneseq
    %v2616 = vshrl.u32 %v2615, 7
    %v2617 = vsub.s32 %v1255, %v2616
    %v2618 = vrot.slane %v2466, %v2617
    %v2619 = vsel %vm1260, %v2618, %v2614
    %v2620 = vlaneseq
    %v2621 = vshrl.u32 %v2620, 7
    %v2622 = vsub.s32 %v1250, %v2621
    %v2623 = vrot.slane %v2469, %v2622
    %v2624 = vlaneseq
    %v2625 = vshrl.u32 %v2624, 7
    %v2626 = vsub.s32 %v1255, %v2625
    %v2627 = vrot.slane %v2472, %v2626
    %v2628 = vsel %vm1260, %v2627, %v2623
    %v2629 = vlaneseq
    %v2630 = vshrl.u32 %v2629, 7
    %v2631 = vsub.s32 %v1250, %v2630
    %v2632 = vrot.slane %v2475, %v2631
    %v2633 = vlaneseq
    %v2634 = vshrl.u32 %v2633, 7
    %v2635 = vsub.s32 %v1255, %v2634
    %v2636 = vrot.slane %v2478, %v2635
    %v2637 = vsel %vm1260, %v2636, %v2632
    %v2638 = vlaneseq
    %v2639 = vshrl.u32 %v2638, 7
    %v2640 = vsub.s32 %v1250, %v2639
    %v2641 = vrot.slane %v2481, %v2640
    %v2642 = vlaneseq
    %v2643 = vshrl.u32 %v2642, 7
    %v2644 = vsub.s32 %v1255, %v2643
    %v2645 = vrot.slane %v2484, %v2644
    %v2646 = vsel %vm1260, %v2645, %v2641
    %v2647 = vlaneseq
    %v2648 = vshrl.u32 %v2647, 7
    %v2649 = vsub.s32 %v1250, %v2648
    %v2650 = vrot.slane %v2487, %v2649
    %v2651 = vlaneseq
    %v2652 = vshrl.u32 %v2651, 7
    %v2653 = vsub.s32 %v1255, %v2652
    %v2654 = vrot.slane %v2490, %v2653
    %v2655 = vsel %vm1260, %v2654, %v2650
    %v2656 = vlaneseq
    %v2657 = vshrl.u32 %v2656, 7
    %v2658 = vsub.s32 %v1250, %v2657
    %v2659 = vrot.slane %v2493, %v2658
    %v2660 = vlaneseq
    %v2661 = vshrl.u32 %v2660, 7
    %v2662 = vsub.s32 %v1255, %v2661
    %v2663 = vrot.slane %v2496, %v2662
    %v2664 = vsel %vm1260, %v2663, %v2659
    %v2665 = vlaneseq
    %v2666 = vshrl.u32 %v2665, 7
    %v2667 = vsub.s32 %v1250, %v2666
    %v2668 = vrot.slane %v2499, %v2667
    %v2669 = vlaneseq
    %v2670 = vshrl.u32 %v2669, 7
    %v2671 = vsub.s32 %v1255, %v2670
    %v2672 = vrot.slane %v2502, %v2671
    %v2673 = vsel %vm1260, %v2672, %v2668
    %v2674 = vlaneseq
    %v2675 = vshrl.u32 %v2674, 7
    %v2676 = vsub.s32 %v1250, %v2675
    %v2677 = vrot.slane %v2505, %v2676
    %v2678 = vlaneseq
    %v2679 = vshrl.u32 %v2678, 7
    %v2680 = vsub.s32 %v1255, %v2679
    %v2681 = vrot.slane %v2508, %v2680
    %v2682 = vsel %vm1260, %v2681, %v2677
    %v2683 = vlaneseq
    %v2684 = vshrl.u32 %v2683, 7
    %v2685 = vsub.s32 %v1250, %v2684
    %v2686 = vrot.slane %v2511, %v2685
    %v2687 = vlaneseq
    %v2688 = vshrl.u32 %v2687, 7
    %v2689 = vsub.s32 %v1255, %v2688
    %v2690 = vrot.slane %v2514, %v2689
    %v2691 = vsel %vm1260, %v2690, %v2686
    %v2692 = vlaneseq
    %v2693 = vshrl.u32 %v2692, 7
    %v2694 = vsub.s32 %v1250, %v2693
    %v2695 = vrot.slane %v2517, %v2694
    %v2696 = vlaneseq
    %v2697 = vshrl.u32 %v2696, 7
    %v2698 = vsub.s32 %v1255, %v2697
    %v2699 = vrot.slane %v2520, %v2698
    %v2700 = vsel %vm1260, %v2699, %v2695
    %v2701 = vlaneseq
    %v2702 = vshrl.u32 %v2701, 7
    %v2703 = vsub.s32 %v1250, %v2702
    %v2704 = vrot.slane %v2523, %v2703
    %v2705 = vlaneseq
    %v2706 = vshrl.u32 %v2705, 7
    %v2707 = vsub.s32 %v1255, %v2706
    %v2708 = vrot.slane %v2526, %v2707
    %v2709 = vsel %vm1260, %v2708, %v2704
    %v2710 = vlaneseq
    %v2711 = vshrl.u32 %v2710, 7
    %v2712 = vsub.s32 %v1250, %v2711
    %v2713 = vrot.slane %v2529, %v2712
    %v2714 = vlaneseq
    %v2715 = vshrl.u32 %v2714, 7
    %v2716 = vsub.s32 %v1255, %v2715
    %v2717 = vrot.slane %v2532, %v2716
    %v2718 = vsel %vm1260, %v2717, %v2713
    %v2719 = vlaneseq
    %v2720 = vshrl.u32 %v2719, 7
    %v2721 = vsub.s32 %v1250, %v2720
    %v2722 = vrot.slane %v2535, %v2721
    %v2723 = vlaneseq
    %v2724 = vshrl.u32 %v2723, 7
    %v2725 = vsub.s32 %v1255, %v2724
    %v2726 = vrot.slane %v2538, %v2725
    %v2727 = vsel %vm1260, %v2726, %v2722
    %v2728 = vlaneseq
    %v2729 = vshrl.u32 %v2728, 7
    %v2730 = vsub.s32 %v1250, %v2729
    %v2731 = vrot.slane %v2541, %v2730
    %v2732 = vlaneseq
    %v2733 = vshrl.u32 %v2732, 7
    %v2734 = vsub.s32 %v1255, %v2733
    %v2735 = vrot.slane %v2544, %v2734
    %v2736 = vsel %vm1260, %v2735, %v2731
    %v2737 = vlaneseq
    %v2738 = vshrl.u32 %v2737, 7
    %v2739 = vsub.s32 %v1250, %v2738
    %v2740 = vrot.slane %v2547, %v2739
    %v2741 = vlaneseq
    %v2742 = vshrl.u32 %v2741, 7
    %v2743 = vsub.s32 %v1255, %v2742
    %v2744 = vrot.slane %v2550, %v2743
    %v2745 = vsel %vm1260, %v2744, %v2740
    %v2746 = vlaneseq
    %v2747 = vshrl.u32 %v2746, 7
    %v2748 = vsub.s32 %v1250, %v2747
    %v2749 = vrot.slane %v2553, %v2748
    %v2750 = vlaneseq
    %v2751 = vshrl.u32 %v2750, 7
    %v2752 = vsub.s32 %v1255, %v2751
    %v2753 = vrot.slane %v2556, %v2752
    %v2754 = vsel %vm1260, %v2753, %v2749
    %v2755 = vlaneseq
    %v2756 = vshrl.u32 %v2755, 7
    %v2757 = vsub.s32 %v1250, %v2756
    %v2758 = vrot.slane %v2559, %v2757
    %v2759 = vlaneseq
    %v2760 = vshrl.u32 %v2759, 7
    %v2761 = vsub.s32 %v1255, %v2760
    %v2762 = vrot.slane %v2562, %v2761
    %v2763 = vsel %vm1260, %v2762, %v2758
    %v2764 = vlaneseq
    %v2765 = vshrl.u32 %v2764, 7
    %v2766 = vsub.s32 %v1250, %v2765
    %v2767 = vrot.slane %v2565, %v2766
    %v2768 = vlaneseq
    %v2769 = vshrl.u32 %v2768, 7
    %v2770 = vsub.s32 %v1255, %v2769
    %v2771 = vrot.slane %v2568, %v2770
    %v2772 = vsel %vm1260, %v2771, %v2767
    %v2773 = vlaneseq
    %v2774 = vshrl.u32 %v2773, 7
    %v2775 = vsub.s32 %v1250, %v2774
    %v2776 = vrot.slane %v2571, %v2775
    %v2777 = vlaneseq
    %v2778 = vshrl.u32 %v2777, 7
    %v2779 = vsub.s32 %v1255, %v2778
    %v2780 = vrot.slane %v2574, %v2779
    %v2781 = vsel %vm1260, %v2780, %v2776
    %v2782 = vlaneseq
    %v2783 = vshrl.u32 %v2782, 7
    %v2784 = vsub.s32 %v1250, %v2783
    %v2785 = vrot.slane %v2577, %v2784
    %v2786 = vlaneseq
    %v2787 = vshrl.u32 %v2786, 7
    %v2788 = vsub.s32 %v1255, %v2787
    %v2789 = vrot.slane %v2580, %v2788
    %v2790 = vsel %vm1260, %v2789, %v2785
    %v2791 = vlaneseq
    %v2792 = vshrl.u32 %v2791, 7
    %v2793 = vsub.s32 %v1250, %v2792
    %v2794 = vrot.slane %v2583, %v2793
    %v2795 = vlaneseq
    %v2796 = vshrl.u32 %v2795, 7
    %v2797 = vsub.s32 %v1255, %v2796
    %v2798 = vrot.slane %v2586, %v2797
    %v2799 = vsel %vm1260, %v2798, %v2794
    %v2800 = vlaneseq
    %v2801 = vshrl.u32 %v2800, 7
    %v2802 = vsub.s32 %v1250, %v2801
    %v2803 = vrot.slane %v2589, %v2802
    %v2804 = vlaneseq
    %v2805 = vshrl.u32 %v2804, 7
    %v2806 = vsub.s32 %v1255, %v2805
    %v2807 = vrot.slane %v2592, %v2806
    %v2808 = vsel %vm1260, %v2807, %v2803
    %v2809 = vsel %vm1469, %v2610, %v2601
    %v2810 = vsel %vm1471, %v2619, %v2809
    %v2811 = vsel %vm1473, %v2628, %v2810
    %v2812 = vsel %vm1475, %v2637, %v2811
    %v2813 = vsel %vm1477, %v2646, %v2812
    %v2814 = vsel %vm1479, %v2655, %v2813
    %v2815 = vsel %vm1481, %v2664, %v2814
    %v2816 = vsel %vm1469, %v2682, %v2673
    %v2817 = vsel %vm1471, %v2691, %v2816
    %v2818 = vsel %vm1473, %v2700, %v2817
    %v2819 = vsel %vm1475, %v2709, %v2818
    %v2820 = vsel %vm1477, %v2718, %v2819
    %v2821 = vsel %vm1479, %v2727, %v2820
    %v2822 = vsel %vm1481, %v2736, %v2821
    %v2823 = vsel %vm1469, %v2754, %v2745
    %v2824 = vsel %vm1471, %v2763, %v2823
    %v2825 = vsel %vm1473, %v2772, %v2824
    %v2826 = vsel %vm1475, %v2781, %v2825
    %v2827 = vsel %vm1477, %v2790, %v2826
    %v2828 = vsel %vm1479, %v2799, %v2827
    %v2829 = vsel %vm1481, %v2808, %v2828
    %2833 = vst.msk [vmem:[%s6] sm:$0xff] %vm1500, %v2815
    %2834 = vst.msk [vmem:[%s6 + $0x8] sm:$0xff] %vm1500, %v2822
    %2835 = vst.msk [vmem:[%s6 + $0x10] sm:$0xff] %vm1500, %v2829
    // Predicated region
    $region42: #{attention_forward.1} parent=1 // pred_check
      _
    $region43: #{attention_forward.1} parent=1 // pred_check_branch
      %2837 = sbr.rel (0) target = $region45
    $region44: #{attention_forward.1} parent=1 // pred_region
      _
    $region45: #{attention_forward.1} parent=1 // pred_fallthru
      _
    // Predicated region
    $region46: #{attention_forward.1} parent=1 // pred_check
      _
    $region47: #{attention_forward.1} parent=1 // pred_check_branch
      %2839 = sbr.rel (0) target = $region49
    $region48: #{attention_forward.1} parent=1 // pred_region
      _
    $region49: #{attention_forward.1} parent=1 // pred_fallthru
      _
    %2840 = vsyncpa [#allocation3], 1
    %2841 = vsyncpa [#allocation5], 1
    %2842 = vsyncpa [#allocation8], 1

</llo_original>
